<compile_context>
chip_gen: v6e
topology: v6e:2x2x1
jax: 0.10.0
libtpu: 0.0.40
codegen_flags: <defaults>
</compile_context>

<pallas_src>
import numpy as np
import jax
import jax.numpy as jnp
from jax import lax
from jax.experimental import pallas as pl
from jax.experimental.pallas import tpu as pltpu


def _round_up(x, m):
    return (x + m - 1) // m * m


# ----------------------------------------------------------------------------
# Pallas kernel: GRU recurrence + dual attention + orthogonality + logits
# ----------------------------------------------------------------------------
def datae_gru_kernel(
    # inputs
    content_ref, asp_ref, mask_ref,
    wih_wT_ref, wih_aT_ref, gbias_ref, whT_ref, bhn_ref,
    wa_hT_ref, wa_aT_ref, ba_ref, wv_ref,
    ws1_ref, ws2_ref, bs_ref,
    # outputs
    logits_ref, sq_ref,
    # scratch (flat, sublane-aligned: Bb % 8 == 0)
    gxr_ref, gxz_ref, gxn_ref, hs_ref,
):
    L, Bb = mask_ref.shape[0], mask_ref.shape[1]
    H = hs_ref.shape[-1]
    f32 = jnp.float32

    asp = asp_ref[...]                                            # (Bb, Ha)

    # ---- input-side gate projection for ALL timesteps: one big MXU matmul,
    #      staged gate-major into flat aligned VMEM scratches (one-time lane
    #      splits here, whole-tile reads inside the serial loop).
    gx = jnp.dot(content_ref[...], wih_wT_ref[...],
                 preferred_element_type=f32)                      # (L*Bb, 3H)
    gxr_ref[...] = gx[:, :H]
    gxz_ref[...] = gx[:, H:2 * H]
    gxn_ref[...] = gx[:, 2 * H:]

    # aspect part of the gates + folded biases (constant over time)
    gasp = jnp.dot(asp, wih_aT_ref[...],
                   preferred_element_type=f32) + gbias_ref[...]   # (Bb, 3H)
    ga_r, ga_z, ga_n = gasp[:, :H], gasp[:, H:2 * H], gasp[:, 2 * H:]

    whT = whT_ref[...]                                            # (H, 3H) fused [W_hr|W_hz|W_hn]^T
    bhn = bhn_ref[...]                                            # (1, H)

    # ---- GRU recurrence: per step = 1 fused matmul + VPU/EUP ops + 1 aligned store
    def gru_step(t, h):
        row = pl.multiple_of(t * Bb, Bb)
        gh = jnp.dot(h, whT, preferred_element_type=f32)          # (Bb, 3H)
        r = jax.nn.sigmoid(gxr_ref[pl.ds(row, Bb), :] + ga_r + gh[:, :H])
        z = jax.nn.sigmoid(gxz_ref[pl.ds(row, Bb), :] + ga_z + gh[:, H:2 * H])
        n = jnp.tanh(gxn_ref[pl.ds(row, Bb), :] + ga_n + r * (gh[:, 2 * H:] + bhn))
        h_new = (1.0 - z) * n + z * h
        hs_ref[pl.ds(row, Bb), :] = h_new
        return h_new

    if L <= 16:
        unroll = True          # small static L: full unroll
    elif L % 8 == 0:
        unroll = 8             # realistic L: partial unroll, bounded live ranges
    elif L % 4 == 0:
        unroll = 4
    else:
        unroll = 1
    lax.fori_loop(0, L, gru_step, jnp.zeros((Bb, H), f32), unroll=unroll)

    # ---- dual attention: ONE batched (L*Bb, H) @ (H, 2H) projection for both heads
    hs2 = hs_ref[...]                                             # (L*Bb, H)
    att_bias = jnp.dot(asp, wa_aT_ref[...],
                       preferred_element_type=f32) + ba_ref[...]  # (Bb, 2H)
    mm = jnp.dot(hs2, wa_hT_ref[...], preferred_element_type=f32)  # (L*Bb, 2H)
    m = jnp.tanh(mm.reshape(L, Bb, 2 * H) + att_bias[None])       # (L, Bb, 2H)

    # per-head scores as VPU multiply + lane reduce (no lane-sparse MXU matmul)
    mw = m * wv_ref[...][None]                                    # (L, Bb, 2H)
    s1 = jnp.sum(mw[:, :, :H], axis=-1, keepdims=True)            # (L, Bb, 1)
    s2 = jnp.sum(mw[:, :, H:], axis=-1, keepdims=True)

    mask = mask_ref[...]                                          # (L, Bb, 1)

    def softmax_over_time(s):
        s = s + mask
        s = s - jnp.max(s, axis=0, keepdims=True)
        e = jnp.exp(s)
        return e / jnp.sum(e, axis=0, keepdims=True)

    w1 = softmax_over_time(s1)                                    # (L, Bb, 1)
    w2 = softmax_over_time(s2)

    hs3 = hs2.reshape(L, Bb, H)
    r1 = jnp.sum(w1 * hs3, axis=0)                                # (Bb, H)
    r2 = jnp.sum(w2 * hs3, axis=0)

    # per-example ||A^T A - I||_F^2 with A = [w1; w2] (2 x L):
    #   ||A A^T||_F^2 - 2 tr(A A^T) + L = p^2 + 2c^2 + q^2 - 2(p + q) + L
    p = jnp.sum(w1 * w1, axis=0)                                  # (Bb, 1)
    q = jnp.sum(w2 * w2, axis=0)
    c = jnp.sum(w1 * w2, axis=0)
    sq_ref[...] = p * p + 2.0 * c * c + q * q - 2.0 * (p + q) + float(L)

    # classifier heads: tiny N=1 work kept on VPU/XLU, off the MXU
    logit1 = jnp.sum(r1 * ws1_ref[...], axis=-1, keepdims=True)   # (Bb, 1)
    logit2 = jnp.sum(r2 * ws2_ref[...], axis=-1, keepdims=True)
    logits_ref[...] = jnp.concatenate([logit1, logit2], axis=1) + bs_ref[...]


# ----------------------------------------------------------------------------
# Glue: embeddings, weight fusing / bias folding, batch padding, pallas_call
# ----------------------------------------------------------------------------
def _full_spec(shape):
    nd = len(shape)
    return pl.BlockSpec(shape, lambda i, _nd=nd: (0,) * _nd)


def _batch_spec(block_shape, batch_axis):
    nd = len(block_shape)

    def imap(i, _nd=nd, _ax=batch_axis):
        return tuple(i if d == _ax else 0 for d in range(_nd))

    return pl.BlockSpec(block_shape, imap)


def datae_gru_forward(content_ids, aspect_ids, mask, params, *, batch_blocks=1):
    """Returns (logits (B, 2) f32, orthogonal loss scalar f32)."""
    we = params["word_embedding"]            # (V, D)
    ae = params["aspect_embedding"]          # (A, Ha)
    L, B = content_ids.shape
    D = we.shape[1]
    Ha = ae.shape[1]
    H = params["W_hh"].shape[1]

    # ---- pad batch to a multiple of 8 * batch_blocks (sublane alignment; the
    #      batch-block grid axis is 'parallel' -> both TensorCores on v7x)
    Bb = _round_up(pl.cdiv(B, batch_blocks), 8)
    Bp = Bb * batch_blocks
    pad = Bp - B
    content_ids_p = jnp.pad(content_ids, ((0, 0), (0, pad)), constant_values=1)
    aspect_ids_p = jnp.pad(aspect_ids, ((0, pad), (0, 0)), constant_values=0)
    mask_p = jnp.pad(mask.astype(jnp.float32), ((0, pad), (0, 0)))

    # embeddings (XLA gathers) + layout prep so every in-kernel access is aligned
    content = we[content_ids_p].astype(jnp.float32)               # (L, Bp, D)
    content = (content.reshape(L, batch_blocks, Bb, D)
               .transpose(1, 0, 2, 3)
               .reshape(batch_blocks * L * Bb, D))                # row = (blk, t, b)
    asp = ae[aspect_ids_p[:, 0]].astype(jnp.float32)              # (Bp, Ha)
    mask3 = mask_p.T[:, :, None]                                  # (L, Bp, 1)

    # ---- GRU weights: split word/aspect parts, transpose, fuse gates, fold biases
    Wih, Whh = params["W_ih"], params["W_hh"]
    bih, bhh = params["b_ih"], params["b_hh"]
    wih_wT = Wih[:, :D].T                                         # (D, 3H)
    wih_aT = Wih[:, D:].T                                         # (Ha, 3H)
    whT = Whh.T                                                   # (H, 3H)
    gbias = jnp.concatenate(
        [bih[:H] + bhh[:H], bih[H:2 * H] + bhh[H:2 * H], bih[2 * H:]])[None]  # (1, 3H)
    bhn = bhh[2 * H:][None]                                       # (1, H)  (kept inside r*(...))

    # ---- attention weights: both heads fused along the output axis
    Wa1, Wa2 = params["W_a"], params["W_a2"]
    wa_hT = jnp.concatenate([Wa1[:, :H].T, Wa2[:, :H].T], axis=1)     # (H, 2H)
    wa_aT = jnp.concatenate([Wa1[:, H:].T, Wa2[:, H:].T], axis=1)     # (Ha, 2H)
    ba_cat = jnp.concatenate([params["b_a"], params["b_a2"]])[None]   # (1, 2H)
    wv_cat = jnp.concatenate([params["w"], params["w2"]], axis=1)     # (1, 2H)

    ws1 = params["W_s"].reshape(1, H)
    ws2 = params["W_s2"].reshape(1, H)
    bs_cat = jnp.concatenate(
        [params["b_s"].reshape(1, 1), params["b_s2"].reshape(1, 1)], axis=1)  # (1, 2)

    weights = (wih_wT, wih_aT, gbias, whT, bhn,
               wa_hT, wa_aT, ba_cat, wv_cat, ws1, ws2, bs_cat)
    weights = tuple(jnp.asarray(w, jnp.float32) for w in weights)

    # ---- VMEM budget from actual buffer sizes + headroom (not a hard-coded cap)
    f32b = 4
    io_bytes = 2 * f32b * (L * Bb * D + Bb * Ha + L * Bb + Bb * 2 + Bb)
    w_bytes = 2 * f32b * int(sum(int(np.prod(w.shape)) for w in weights))
    scratch_bytes = f32b * 4 * L * Bb * H
    temp_bytes = f32b * L * Bb * (3 * H + 3 * 2 * H)   # gx value + mm/m/mw temporaries
    vmem_limit = int(min(max(io_bytes + w_bytes + scratch_bytes + temp_bytes + (8 << 20),
                             32 << 20), 64 << 20))

    grid_spec = pltpu.PrefetchScalarGridSpec(
        num_scalar_prefetch=0,
        grid=(batch_blocks,),
        in_specs=[
            _batch_spec((L * Bb, D), 0),      # content rows for this batch block
            _batch_spec((Bb, Ha), 0),         # aspect embedding
            _batch_spec((L, Bb, 1), 1),       # additive attention mask
        ] + [_full_spec(w.shape) for w in weights],
        out_specs=(
            _batch_spec((Bb, 2), 0),          # logits
            _batch_spec((Bb, 1), 0),          # per-example ||A^T A - I||_F^2
        ),
        scratch_shapes=[
            pltpu.VMEM((L * Bb, H), jnp.float32),   # input-side gate r
            pltpu.VMEM((L * Bb, H), jnp.float32),   # input-side gate z
            pltpu.VMEM((L * Bb, H), jnp.float32),   # input-side gate n
            pltpu.VMEM((L * Bb, H), jnp.float32),   # hidden states
        ],
    )

    logits_p, sq_p = pl.pallas_call(
        datae_gru_kernel,
        out_shape=(jax.ShapeDtypeStruct((Bp, 2), jnp.float32),
                   jax.ShapeDtypeStruct((Bp, 1), jnp.float32)),
        grid_spec=grid_spec,
        compiler_params=pltpu.CompilerParams(
            dimension_semantics=("parallel",),
            vmem_limit_bytes=vmem_limit,
        ),
    )(content, asp, mask3, *weights)

    logits = logits_p[:B]
    loss = jnp.sqrt(jnp.sum(sq_p[:B, 0])) / float(L)
    return logits, loss


# ----------------------------------------------------------------------------
# Pure-JAX reference (mirrors the PyTorch forward exactly) for validation
# ----------------------------------------------------------------------------
def reference_forward(content_ids, aspect_ids, mask, params):
    we, ae = params["word_embedding"], params["aspect_embedding"]
    L, B = content_ids.shape
    H = params["W_hh"].shape[1]
    content = we[content_ids]                                   # (L, B, D)
    asp = ae[aspect_ids[:, 0]]                                  # (B, Ha)
    asp_lb = jnp.broadcast_to(asp[None, :, :], (L, B, asp.shape[1]))
    x = jnp.concatenate([content, asp_lb], axis=2)

    Wih, Whh = params["W_ih"], params["W_hh"]
    bih, bhh = params["b_ih"], params["b_hh"]

    def step(h, xt):
        gx = xt @ Wih.T + bih
        gh = h @ Whh.T + bhh
        r = jax.nn.sigmoid(gx[:, :H] + gh[:, :H])
        z = jax.nn.sigmoid(gx[:, H:2 * H] + gh[:, H:2 * H])
        n = jnp.tanh(gx[:, 2 * H:] + r * gh[:, 2 * H:])
        h_new = (1.0 - z) * n + z * h
        return h_new, h_new

    _, hs = lax.scan(step, jnp.zeros((B, H), jnp.float32), x)   # (L, B, H)

    cat = jnp.concatenate([hs, asp_lb], axis=2)                 # (L, B, H+Ha)

    def attn(Wa, ba, wv):
        M = jnp.tanh(jnp.einsum("lbd,hd->lbh", cat, Wa) + ba)
        s = jnp.einsum("lbh,oh->lbo", M, wv)[:, :, 0].T + mask  # (B, L)
        w = jax.nn.softmax(s, axis=1)
        r = jnp.einsum("bl,lbh->bh", w, hs)
        return w, r

    w1, r1 = attn(params["W_a"], params["b_a"], params["w"])
    w2, r2 = attn(params["W_a2"], params["b_a2"], params["w2"])

    A = jnp.stack([w1, w2], axis=1)                             # (B, 2, L)
    G = jnp.einsum("bkl,bkm->blm", A, A) - jnp.eye(L)[None]
    loss = jnp.sqrt(jnp.sum(G * G)) / L

    logits1 = r1 @ params["W_s"].T + params["b_s"]
    logits2 = r2 @ params["W_s2"].T + params["b_s2"]
    return jnp.concatenate([logits1, logits2], axis=1), loss


# ----------------------------------------------------------------------------
# Deterministic parameter init (shapes from DATAE_GRU.__init__)
# ----------------------------------------------------------------------------
def init_params(key, V, A, D, Ha, H):
    ks = jax.random.split(key, 16)

    def nrm(k, shape, std=0.1):
        return (jax.random.normal(k, shape) * std).astype(jnp.float32)

    p = dict(
        word_embedding=nrm(ks[0], (V, D), 0.5),
        aspect_embedding=nrm(ks[1], (A, Ha), 0.5),
        W_ih=nrm(ks[2], (3 * H, D + Ha)),
        W_hh=nrm(ks[3], (3 * H, H)),
        b_ih=nrm(ks[4], (3 * H,)),
        b_hh=nrm(ks[5], (3 * H,)),
        W_a=nrm(ks[6], (H, H + Ha)),
        b_a=nrm(ks[7], (H,)),
        w=nrm(ks[8], (1, H)),
        W_a2=nrm(ks[9], (H, H + Ha)),
        b_a2=nrm(ks[10], (H,)),
        w2=nrm(ks[11], (1, H)),
        W_s=nrm(ks[12], (1, H)),
        b_s=nrm(ks[13], (1, 1)),
        W_s2=nrm(ks[14], (1, H)),
        b_s2=nrm(ks[15], (1, 1)),
    )
    # nn.Embedding(padding_idx=1): zero out padding row
    p["word_embedding"] = p["word_embedding"].at[1].set(0.0)
    return p


if __name__ == "__main__":
    V, A_num = 50, 6          # embed_num, aspect_num
    D = H = Ha = 32           # embed_dim = hidden = aspect_embed_dim

    root = jax.random.PRNGKey(0)
    kp, kd1, kd2 = jax.random.split(root, 3)
    params = init_params(kp, V, A_num, D, Ha, H)

    # ---- test 1: tiny batch (padded 2 -> 8), single grid block ---------------
    L, B = 8, 2
    kc, ka = jax.random.split(kd1)
    content_ids = jax.random.randint(kc, (L, B), 0, V)          # (L, B) word ids
    aspect_ids = jax.random.randint(ka, (B, 1), 0, A_num)       # (B, 1) aspect ids
    mask = jnp.zeros((B, L), jnp.float32).at[0, L - 2:].set(-1e4)

    logits, loss = datae_gru_forward(content_ids, aspect_ids, mask, params,
                                     batch_blocks=1)
    logits = jax.block_until_ready(logits)
    loss = jax.block_until_ready(loss)
    ref_logits, ref_loss = reference_forward(content_ids, aspect_ids, mask, params)
    assert np.allclose(np.asarray(logits), np.asarray(ref_logits),
                       rtol=1e-3, atol=1e-4), (logits, ref_logits)
    assert np.allclose(float(loss), float(ref_loss),
                       rtol=1e-3, atol=1e-4), (loss, ref_loss)

    # ---- test 2: ragged/padded batch split over a 2-wide parallel grid -------
    L2, B2 = 12, 10
    kc2, ka2, kl2 = jax.random.split(kd2, 3)
    content_ids2 = jax.random.randint(kc2, (L2, B2), 0, V)
    aspect_ids2 = jax.random.randint(ka2, (B2, 1), 0, A_num)
    lengths = jax.random.randint(kl2, (B2,), 4, L2 + 1)
    mask2 = jnp.where(jnp.arange(L2)[None, :] >= lengths[:, None],
                      -1e4, 0.0).astype(jnp.float32)

    logits2, loss2 = datae_gru_forward(content_ids2, aspect_ids2, mask2, params,
                                       batch_blocks=2)
    logits2 = jax.block_until_ready(logits2)
    loss2 = jax.block_until_ready(loss2)
    ref_logits2, ref_loss2 = reference_forward(content_ids2, aspect_ids2, mask2, params)
    assert np.allclose(np.asarray(logits2), np.asarray(ref_logits2),
                       rtol=1e-3, atol=1e-4), (logits2, ref_logits2)
    assert np.allclose(float(loss2), float(ref_loss2),
                       rtol=1e-3, atol=1e-4), (loss2, ref_loss2)

    print("KERNEL_OK")
</pallas_src>

<mosaic_0001>
module attributes {stable_mosaic.version = 11 : i64} {
  func.func @datae_gru_kernel(%arg0: i32, %arg1: memref<64x32xf32, #tpu.memory_space<vmem>>, %arg2: memref<8x32xf32, #tpu.memory_space<vmem>>, %arg3: memref<8x8x1xf32, #tpu.memory_space<vmem>>, %arg4: memref<32x96xf32, #tpu.memory_space<vmem>>, %arg5: memref<32x96xf32, #tpu.memory_space<vmem>>, %arg6: memref<1x96xf32, #tpu.memory_space<vmem>>, %arg7: memref<32x96xf32, #tpu.memory_space<vmem>>, %arg8: memref<1x32xf32, #tpu.memory_space<vmem>>, %arg9: memref<32x64xf32, #tpu.memory_space<vmem>>, %arg10: memref<32x64xf32, #tpu.memory_space<vmem>>, %arg11: memref<1x64xf32, #tpu.memory_space<vmem>>, %arg12: memref<1x64xf32, #tpu.memory_space<vmem>>, %arg13: memref<1x32xf32, #tpu.memory_space<vmem>>, %arg14: memref<1x32xf32, #tpu.memory_space<vmem>>, %arg15: memref<1x2xf32, #tpu.memory_space<vmem>>, %arg16: memref<8x2xf32, #tpu.memory_space<vmem>>, %arg17: memref<8x1xf32, #tpu.memory_space<vmem>>, %arg18: memref<64x32xf32, #tpu.memory_space<vmem>>, %arg19: memref<64x32xf32, #tpu.memory_space<vmem>>, %arg20: memref<64x32xf32, #tpu.memory_space<vmem>>, %arg21: memref<64x32xf32, #tpu.memory_space<vmem>>) attributes {dimension_semantics = [#tpu.dimension_semantics<parallel>], iteration_bounds = array<i64: 1>, scalar_prefetch = 0 : i64, scratch_operands = 4 : i64, tpu.core_type = #tpu.core_type<tc>, window_params = [{transform_indices = @transform_0, window_bounds = array<i64: 64, 32>}, {transform_indices = @transform_1, window_bounds = array<i64: 8, 32>}, {transform_indices = @transform_2, window_bounds = array<i64: 8, 8, 1>}, {pipeline_mode = #tpu.pipeline_mode<synchronous>, transform_indices = @transform_3, window_bounds = array<i64: 32, 96>}, {pipeline_mode = #tpu.pipeline_mode<synchronous>, transform_indices = @transform_4, window_bounds = array<i64: 32, 96>}, {pipeline_mode = #tpu.pipeline_mode<synchronous>, transform_indices = @transform_5, window_bounds = array<i64: 1, 96>}, {pipeline_mode = #tpu.pipeline_mode<synchronous>, transform_indices = @transform_6, window_bounds = array<i64: 32, 96>}, {pipeline_mode = #tpu.pipeline_mode<synchronous>, transform_indices = @transform_7, window_bounds = array<i64: 1, 32>}, {pipeline_mode = #tpu.pipeline_mode<synchronous>, transform_indices = @transform_8, window_bounds = array<i64: 32, 64>}, {pipeline_mode = #tpu.pipeline_mode<synchronous>, transform_indices = @transform_9, window_bounds = array<i64: 32, 64>}, {pipeline_mode = #tpu.pipeline_mode<synchronous>, transform_indices = @transform_10, window_bounds = array<i64: 1, 64>}, {pipeline_mode = #tpu.pipeline_mode<synchronous>, transform_indices = @transform_11, window_bounds = array<i64: 1, 64>}, {pipeline_mode = #tpu.pipeline_mode<synchronous>, transform_indices = @transform_12, window_bounds = array<i64: 1, 32>}, {pipeline_mode = #tpu.pipeline_mode<synchronous>, transform_indices = @transform_13, window_bounds = array<i64: 1, 32>}, {pipeline_mode = #tpu.pipeline_mode<synchronous>, transform_indices = @transform_14, window_bounds = array<i64: 1, 2>}, {transform_indices = @transform_15, window_bounds = array<i64: 8, 2>}, {transform_indices = @transform_16, window_bounds = array<i64: 8, 1>}]} {
    %c0 = arith.constant 0 : index
    %c0_0 = arith.constant 0 : index
    %0 = vector.load %arg2[%c0, %c0_0] : memref<8x32xf32, #tpu.memory_space<vmem>>, vector<8x32xf32>
    %c0_1 = arith.constant 0 : index
    %c0_2 = arith.constant 0 : index
    %1 = vector.load %arg1[%c0_1, %c0_2] : memref<64x32xf32, #tpu.memory_space<vmem>>, vector<64x32xf32>
    %c0_3 = arith.constant 0 : index
    %c0_4 = arith.constant 0 : index
    %2 = vector.load %arg4[%c0_3, %c0_4] : memref<32x96xf32, #tpu.memory_space<vmem>>, vector<32x96xf32>
    %cst = arith.constant dense<0.000000e+00> : vector<64x96xf32>
    %3 = tpu.matmul %1, %2, %cst {dimension_numbers = #tpu.dot_dimension_numbers<[1], [0], [0], [1], [0, 0, 1, 1], [], []>} : vector<64x32xf32>, vector<32x96xf32>, vector<64x96xf32> -> vector<64x96xf32>
    %4 = vector.extract_strided_slice %3 {offsets = [0, 0], sizes = [64, 32], strides = [1, 1]} : vector<64x96xf32> to vector<64x32xf32>
    %c0_5 = arith.constant 0 : index
    %c0_6 = arith.constant 0 : index
    %5 = vector.load %arg18[%c0_5, %c0_6] : memref<64x32xf32, #tpu.memory_space<vmem>>, vector<64x32xf32>
    tpu.vector_store %arg18[%c0_5, %c0_6], %4 {strides = array<i32>} : memref<64x32xf32, #tpu.memory_space<vmem>>, vector<64x32xf32>,
    %6 = vector.extract_strided_slice %3 {offsets = [0, 32], sizes = [64, 32], strides = [1, 1]} : vector<64x96xf32> to vector<64x32xf32>
    %c0_7 = arith.constant 0 : index
    %c0_8 = arith.constant 0 : index
    %7 = vector.load %arg19[%c0_7, %c0_8] : memref<64x32xf32, #tpu.memory_space<vmem>>, vector<64x32xf32>
    tpu.vector_store %arg19[%c0_7, %c0_8], %6 {strides = array<i32>} : memref<64x32xf32, #tpu.memory_space<vmem>>, vector<64x32xf32>,
    %8 = vector.extract_strided_slice %3 {offsets = [0, 64], sizes = [64, 32], strides = [1, 1]} : vector<64x96xf32> to vector<64x32xf32>
    %c0_9 = arith.constant 0 : index
    %c0_10 = arith.constant 0 : index
    %9 = vector.load %arg20[%c0_9, %c0_10] : memref<64x32xf32, #tpu.memory_space<vmem>>, vector<64x32xf32>
    tpu.vector_store %arg20[%c0_9, %c0_10], %8 {strides = array<i32>} : memref<64x32xf32, #tpu.memory_space<vmem>>, vector<64x32xf32>,
    %c0_11 = arith.constant 0 : index
    %c0_12 = arith.constant 0 : index
    %10 = vector.load %arg5[%c0_11, %c0_12] : memref<32x96xf32, #tpu.memory_space<vmem>>, vector<32x96xf32>
    %cst_13 = arith.constant dense<0.000000e+00> : vector<8x96xf32>
    %11 = tpu.matmul %0, %10, %cst_13 {dimension_numbers = #tpu.dot_dimension_numbers<[1], [0], [0], [1], [0, 0, 1, 1], [], []>} : vector<8x32xf32>, vector<32x96xf32>, vector<8x96xf32> -> vector<8x96xf32>
    %c0_14 = arith.constant 0 : index
    %c0_15 = arith.constant 0 : index
    %12 = vector.load %arg6[%c0_14, %c0_15] : memref<1x96xf32, #tpu.memory_space<vmem>>, vector<1x96xf32>
    %13 = vector.broadcast %12 : vector<1x96xf32> to vector<8x96xf32>
    %14 = arith.addf %11, %13 : vector<8x96xf32>
    %15 = vector.extract_strided_slice %14 {offsets = [0, 0], sizes = [8, 32], strides = [1, 1]} : vector<8x96xf32> to vector<8x32xf32>
    %16 = vector.extract_strided_slice %14 {offsets = [0, 32], sizes = [8, 32], strides = [1, 1]} : vector<8x96xf32> to vector<8x32xf32>
    %17 = vector.extract_strided_slice %14 {offsets = [0, 64], sizes = [8, 32], strides = [1, 1]} : vector<8x96xf32> to vector<8x32xf32>
    %c0_16 = arith.constant 0 : index
    %c0_17 = arith.constant 0 : index
    %18 = vector.load %arg7[%c0_16, %c0_17] : memref<32x96xf32, #tpu.memory_space<vmem>>, vector<32x96xf32>
    %c0_18 = arith.constant 0 : index
    %c0_19 = arith.constant 0 : index
    %19 = vector.load %arg8[%c0_18, %c0_19] : memref<1x32xf32, #tpu.memory_space<vmem>>, vector<1x32xf32>
    %cst_20 = arith.constant 0.000000e+00 : f32
    %20 = vector.broadcast %cst_20 : f32 to vector<8x32xf32>
    %c0_i32 = arith.constant 0 : i32
    %c8_i32 = arith.constant 8 : i32
    %21 = arith.muli %c0_i32, %c8_i32 : i32
    %22 = tpu.assume_multiple %21, 8 : i32
    %cst_21 = arith.constant dense<0.000000e+00> : vector<8x96xf32>
    %23 = tpu.matmul %20, %18, %cst_21 {dimension_numbers = #tpu.dot_dimension_numbers<[1], [0], [0], [1], [0, 0, 1, 1], [], []>} : vector<8x32xf32>, vector<32x96xf32>, vector<8x96xf32> -> vector<8x96xf32>
    %24 = arith.index_cast %22 : i32 to index
    %c0_22 = arith.constant 0 : index
    %25 = vector.load %arg18[%24, %c0_22] : memref<64x32xf32, #tpu.memory_space<vmem>>, vector<8x32xf32>
    %26 = arith.addf %25, %15 : vector<8x32xf32>
    %27 = vector.extract_strided_slice %23 {offsets = [0, 0], sizes = [8, 32], strides = [1, 1]} : vector<8x96xf32> to vector<8x32xf32>
    %28 = arith.addf %26, %27 : vector<8x32xf32>
    %29 = arith.negf %28 : vector<8x32xf32>
    %30 = math.exp %29 : vector<8x32xf32>
    %cst_23 = arith.constant 1.000000e+00 : f32
    %31 = vector.broadcast %cst_23 : f32 to vector<8x32xf32>
    %32 = arith.addf %31, %30 : vector<8x32xf32>
    %33 = arith.divf %31, %32 : vector<8x32xf32>
    %34 = arith.index_cast %22 : i32 to index
    %c0_24 = arith.constant 0 : index
    %35 = vector.load %arg19[%34, %c0_24] : memref<64x32xf32, #tpu.memory_space<vmem>>, vector<8x32xf32>
    %36 = arith.addf %35, %16 : vector<8x32xf32>
    %37 = vector.extract_strided_slice %23 {offsets = [0, 32], sizes = [8, 32], strides = [1, 1]} : vector<8x96xf32> to vector<8x32xf32>
    %38 = arith.addf %36, %37 : vector<8x32xf32>
    %39 = arith.negf %38 : vector<8x32xf32>
    %40 = math.exp %39 : vector<8x32xf32>
    %cst_25 = arith.constant 1.000000e+00 : f32
    %41 = vector.broadcast %cst_25 : f32 to vector<8x32xf32>
    %42 = arith.addf %41, %40 : vector<8x32xf32>
    %43 = arith.divf %41, %42 : vector<8x32xf32>
    %44 = arith.index_cast %22 : i32 to index
    %c0_26 = arith.constant 0 : index
    %45 = vector.load %arg20[%44, %c0_26] : memref<64x32xf32, #tpu.memory_space<vmem>>, vector<8x32xf32>
    %46 = arith.addf %45, %17 : vector<8x32xf32>
    %47 = vector.extract_strided_slice %23 {offsets = [0, 64], sizes = [8, 32], strides = [1, 1]} : vector<8x96xf32> to vector<8x32xf32>
    %48 = vector.broadcast %19 : vector<1x32xf32> to vector<8x32xf32>
    %49 = arith.addf %47, %48 : vector<8x32xf32>
    %50 = arith.mulf %33, %49 : vector<8x32xf32>
    %51 = arith.addf %46, %50 : vector<8x32xf32>
    %52 = math.tanh %51 : vector<8x32xf32>
    %cst_27 = arith.constant 1.000000e+00 : f32
    %53 = vector.broadcast %cst_27 : f32 to vector<8x32xf32>
    %54 = arith.subf %53, %43 : vector<8x32xf32>
    %55 = arith.mulf %54, %52 : vector<8x32xf32>
    %56 = arith.mulf %43, %20 : vector<8x32xf32>
    %57 = arith.addf %55, %56 : vector<8x32xf32>
    %58 = arith.index_cast %22 : i32 to index
    %c0_28 = arith.constant 0 : index
    %59 = vector.load %arg21[%58, %c0_28] : memref<64x32xf32, #tpu.memory_space<vmem>>, vector<8x32xf32>
    tpu.vector_store %arg21[%58, %c0_28], %57 {strides = array<i32>} : memref<64x32xf32, #tpu.memory_space<vmem>>, vector<8x32xf32>,
    %c1_i32 = arith.constant 1 : i32
    %c8_i32_29 = arith.constant 8 : i32
    %60 = arith.muli %c1_i32, %c8_i32_29 : i32
    %61 = tpu.assume_multiple %60, 8 : i32
    %cst_30 = arith.constant dense<0.000000e+00> : vector<8x96xf32>
    %62 = tpu.matmul %57, %18, %cst_30 {dimension_numbers = #tpu.dot_dimension_numbers<[1], [0], [0], [1], [0, 0, 1, 1], [], []>} : vector<8x32xf32>, vector<32x96xf32>, vector<8x96xf32> -> vector<8x96xf32>
    %63 = arith.index_cast %61 : i32 to index
    %c0_31 = arith.constant 0 : index
    %64 = vector.load %arg18[%63, %c0_31] : memref<64x32xf32, #tpu.memory_space<vmem>>, vector<8x32xf32>
    %65 = arith.addf %64, %15 : vector<8x32xf32>
    %66 = vector.extract_strided_slice %62 {offsets = [0, 0], sizes = [8, 32], strides = [1, 1]} : vector<8x96xf32> to vector<8x32xf32>
    %67 = arith.addf %65, %66 : vector<8x32xf32>
    %68 = arith.negf %67 : vector<8x32xf32>
    %69 = math.exp %68 : vector<8x32xf32>
    %cst_32 = arith.constant 1.000000e+00 : f32
    %70 = vector.broadcast %cst_32 : f32 to vector<8x32xf32>
    %71 = arith.addf %70, %69 : vector<8x32xf32>
    %72 = arith.divf %70, %71 : vector<8x32xf32>
    %73 = arith.index_cast %61 : i32 to index
    %c0_33 = arith.constant 0 : index
    %74 = vector.load %arg19[%73, %c0_33] : memref<64x32xf32, #tpu.memory_space<vmem>>, vector<8x32xf32>
    %75 = arith.addf %74, %16 : vector<8x32xf32>
    %76 = vector.extract_strided_slice %62 {offsets = [0, 32], sizes = [8, 32], strides = [1, 1]} : vector<8x96xf32> to vector<8x32xf32>
    %77 = arith.addf %75, %76 : vector<8x32xf32>
    %78 = arith.negf %77 : vector<8x32xf32>
    %79 = math.exp %78 : vector<8x32xf32>
    %cst_34 = arith.constant 1.000000e+00 : f32
    %80 = vector.broadcast %cst_34 : f32 to vector<8x32xf32>
    %81 = arith.addf %80, %79 : vector<8x32xf32>
    %82 = arith.divf %80, %81 : vector<8x32xf32>
    %83 = arith.index_cast %61 : i32 to index
    %c0_35 = arith.constant 0 : index
    %84 = vector.load %arg20[%83, %c0_35] : memref<64x32xf32, #tpu.memory_space<vmem>>, vector<8x32xf32>
    %85 = arith.addf %84, %17 : vector<8x32xf32>
    %86 = vector.extract_strided_slice %62 {offsets = [0, 64], sizes = [8, 32], strides = [1, 1]} : vector<8x96xf32> to vector<8x32xf32>
    %87 = vector.broadcast %19 : vector<1x32xf32> to vector<8x32xf32>
    %88 = arith.addf %86, %87 : vector<8x32xf32>
    %89 = arith.mulf %72, %88 : vector<8x32xf32>
    %90 = arith.addf %85, %89 : vector<8x32xf32>
    %91 = math.tanh %90 : vector<8x32xf32>
    %cst_36 = arith.constant 1.000000e+00 : f32
    %92 = vector.broadcast %cst_36 : f32 to vector<8x32xf32>
    %93 = arith.subf %92, %82 : vector<8x32xf32>
    %94 = arith.mulf %93, %91 : vector<8x32xf32>
    %95 = arith.mulf %82, %57 : vector<8x32xf32>
    %96 = arith.addf %94, %95 : vector<8x32xf32>
    %97 = arith.index_cast %61 : i32 to index
    %c0_37 = arith.constant 0 : index
    %98 = vector.load %arg21[%97, %c0_37] : memref<64x32xf32, #tpu.memory_space<vmem>>, vector<8x32xf32>
    tpu.vector_store %arg21[%97, %c0_37], %96 {strides = array<i32>} : memref<64x32xf32, #tpu.memory_space<vmem>>, vector<8x32xf32>,
    %c2_i32 = arith.constant 2 : i32
    %c8_i32_38 = arith.constant 8 : i32
    %99 = arith.muli %c2_i32, %c8_i32_38 : i32
    %100 = tpu.assume_multiple %99, 8 : i32
    %cst_39 = arith.constant dense<0.000000e+00> : vector<8x96xf32>
    %101 = tpu.matmul %96, %18, %cst_39 {dimension_numbers = #tpu.dot_dimension_numbers<[1], [0], [0], [1], [0, 0, 1, 1], [], []>} : vector<8x32xf32>, vector<32x96xf32>, vector<8x96xf32> -> vector<8x96xf32>
    %102 = arith.index_cast %100 : i32 to index
    %c0_40 = arith.constant 0 : index
    %103 = vector.load %arg18[%102, %c0_40] : memref<64x32xf32, #tpu.memory_space<vmem>>, vector<8x32xf32>
    %104 = arith.addf %103, %15 : vector<8x32xf32>
    %105 = vector.extract_strided_slice %101 {offsets = [0, 0], sizes = [8, 32], strides = [1, 1]} : vector<8x96xf32> to vector<8x32xf32>
    %106 = arith.addf %104, %105 : vector<8x32xf32>
    %107 = arith.negf %106 : vector<8x32xf32>
    %108 = math.exp %107 : vector<8x32xf32>
    %cst_41 = arith.constant 1.000000e+00 : f32
    %109 = vector.broadcast %cst_41 : f32 to vector<8x32xf32>
    %110 = arith.addf %109, %108 : vector<8x32xf32>
    %111 = arith.divf %109, %110 : vector<8x32xf32>
    %112 = arith.index_cast %100 : i32 to index
    %c0_42 = arith.constant 0 : index
    %113 = vector.load %arg19[%112, %c0_42] : memref<64x32xf32, #tpu.memory_space<vmem>>, vector<8x32xf32>
    %114 = arith.addf %113, %16 : vector<8x32xf32>
    %115 = vector.extract_strided_slice %101 {offsets = [0, 32], sizes = [8, 32], strides = [1, 1]} : vector<8x96xf32> to vector<8x32xf32>
    %116 = arith.addf %114, %115 : vector<8x32xf32>
    %117 = arith.negf %116 : vector<8x32xf32>
    %118 = math.exp %117 : vector<8x32xf32>
    %cst_43 = arith.constant 1.000000e+00 : f32
    %119 = vector.broadcast %cst_43 : f32 to vector<8x32xf32>
    %120 = arith.addf %119, %118 : vector<8x32xf32>
    %121 = arith.divf %119, %120 : vector<8x32xf32>
    %122 = arith.index_cast %100 : i32 to index
    %c0_44 = arith.constant 0 : index
    %123 = vector.load %arg20[%122, %c0_44] : memref<64x32xf32, #tpu.memory_space<vmem>>, vector<8x32xf32>
    %124 = arith.addf %123, %17 : vector<8x32xf32>
    %125 = vector.extract_strided_slice %101 {offsets = [0, 64], sizes = [8, 32], strides = [1, 1]} : vector<8x96xf32> to vector<8x32xf32>
    %126 = vector.broadcast %19 : vector<1x32xf32> to vector<8x32xf32>
    %127 = arith.addf %125, %126 : vector<8x32xf32>
    %128 = arith.mulf %111, %127 : vector<8x32xf32>
    %129 = arith.addf %124, %128 : vector<8x32xf32>
    %130 = math.tanh %129 : vector<8x32xf32>
    %cst_45 = arith.constant 1.000000e+00 : f32
    %131 = vector.broadcast %cst_45 : f32 to vector<8x32xf32>
    %132 = arith.subf %131, %121 : vector<8x32xf32>
    %133 = arith.mulf %132, %130 : vector<8x32xf32>
    %134 = arith.mulf %121, %96 : vector<8x32xf32>
    %135 = arith.addf %133, %134 : vector<8x32xf32>
    %136 = arith.index_cast %100 : i32 to index
    %c0_46 = arith.constant 0 : index
    %137 = vector.load %arg21[%136, %c0_46] : memref<64x32xf32, #tpu.memory_space<vmem>>, vector<8x32xf32>
    tpu.vector_store %arg21[%136, %c0_46], %135 {strides = array<i32>} : memref<64x32xf32, #tpu.memory_space<vmem>>, vector<8x32xf32>,
    %c3_i32 = arith.constant 3 : i32
    %c8_i32_47 = arith.constant 8 : i32
    %138 = arith.muli %c3_i32, %c8_i32_47 : i32
    %139 = tpu.assume_multiple %138, 8 : i32
    %cst_48 = arith.constant dense<0.000000e+00> : vector<8x96xf32>
    %140 = tpu.matmul %135, %18, %cst_48 {dimension_numbers = #tpu.dot_dimension_numbers<[1], [0], [0], [1], [0, 0, 1, 1], [], []>} : vector<8x32xf32>, vector<32x96xf32>, vector<8x96xf32> -> vector<8x96xf32>
    %141 = arith.index_cast %139 : i32 to index
    %c0_49 = arith.constant 0 : index
    %142 = vector.load %arg18[%141, %c0_49] : memref<64x32xf32, #tpu.memory_space<vmem>>, vector<8x32xf32>
    %143 = arith.addf %142, %15 : vector<8x32xf32>
    %144 = vector.extract_strided_slice %140 {offsets = [0, 0], sizes = [8, 32], strides = [1, 1]} : vector<8x96xf32> to vector<8x32xf32>
    %145 = arith.addf %143, %144 : vector<8x32xf32>
    %146 = arith.negf %145 : vector<8x32xf32>
    %147 = math.exp %146 : vector<8x32xf32>
    %cst_50 = arith.constant 1.000000e+00 : f32
    %148 = vector.broadcast %cst_50 : f32 to vector<8x32xf32>
    %149 = arith.addf %148, %147 : vector<8x32xf32>
    %150 = arith.divf %148, %149 : vector<8x32xf32>
    %151 = arith.index_cast %139 : i32 to index
    %c0_51 = arith.constant 0 : index
    %152 = vector.load %arg19[%151, %c0_51] : memref<64x32xf32, #tpu.memory_space<vmem>>, vector<8x32xf32>
    %153 = arith.addf %152, %16 : vector<8x32xf32>
    %154 = vector.extract_strided_slice %140 {offsets = [0, 32], sizes = [8, 32], strides = [1, 1]} : vector<8x96xf32> to vector<8x32xf32>
    %155 = arith.addf %153, %154 : vector<8x32xf32>
    %156 = arith.negf %155 : vector<8x32xf32>
    %157 = math.exp %156 : vector<8x32xf32>
    %cst_52 = arith.constant 1.000000e+00 : f32
    %158 = vector.broadcast %cst_52 : f32 to vector<8x32xf32>
    %159 = arith.addf %158, %157 : vector<8x32xf32>
    %160 = arith.divf %158, %159 : vector<8x32xf32>
    %161 = arith.index_cast %139 : i32 to index
    %c0_53 = arith.constant 0 : index
    %162 = vector.load %arg20[%161, %c0_53] : memref<64x32xf32, #tpu.memory_space<vmem>>, vector<8x32xf32>
    %163 = arith.addf %162, %17 : vector<8x32xf32>
    %164 = vector.extract_strided_slice %140 {offsets = [0, 64], sizes = [8, 32], strides = [1, 1]} : vector<8x96xf32> to vector<8x32xf32>
    %165 = vector.broadcast %19 : vector<1x32xf32> to vector<8x32xf32>
    %166 = arith.addf %164, %165 : vector<8x32xf32>
    %167 = arith.mulf %150, %166 : vector<8x32xf32>
    %168 = arith.addf %163, %167 : vector<8x32xf32>
    %169 = math.tanh %168 : vector<8x32xf32>
    %cst_54 = arith.constant 1.000000e+00 : f32
    %170 = vector.broadcast %cst_54 : f32 to vector<8x32xf32>
    %171 = arith.subf %170, %160 : vector<8x32xf32>
    %172 = arith.mulf %171, %169 : vector<8x32xf32>
    %173 = arith.mulf %160, %135 : vector<8x32xf32>
    %174 = arith.addf %172, %173 : vector<8x32xf32>
    %175 = arith.index_cast %139 : i32 to index
    %c0_55 = arith.constant 0 : index
    %176 = vector.load %arg21[%175, %c0_55] : memref<64x32xf32, #tpu.memory_space<vmem>>, vector<8x32xf32>
    tpu.vector_store %arg21[%175, %c0_55], %174 {strides = array<i32>} : memref<64x32xf32, #tpu.memory_space<vmem>>, vector<8x32xf32>,
    %c4_i32 = arith.constant 4 : i32
    %c8_i32_56 = arith.constant 8 : i32
    %177 = arith.muli %c4_i32, %c8_i32_56 : i32
    %178 = tpu.assume_multiple %177, 8 : i32
    %cst_57 = arith.constant dense<0.000000e+00> : vector<8x96xf32>
    %179 = tpu.matmul %174, %18, %cst_57 {dimension_numbers = #tpu.dot_dimension_numbers<[1], [0], [0], [1], [0, 0, 1, 1], [], []>} : vector<8x32xf32>, vector<32x96xf32>, vector<8x96xf32> -> vector<8x96xf32>
    %180 = arith.index_cast %178 : i32 to index
    %c0_58 = arith.constant 0 : index
    %181 = vector.load %arg18[%180, %c0_58] : memref<64x32xf32, #tpu.memory_space<vmem>>, vector<8x32xf32>
    %182 = arith.addf %181, %15 : vector<8x32xf32>
    %183 = vector.extract_strided_slice %179 {offsets = [0, 0], sizes = [8, 32], strides = [1, 1]} : vector<8x96xf32> to vector<8x32xf32>
    %184 = arith.addf %182, %183 : vector<8x32xf32>
    %185 = arith.negf %184 : vector<8x32xf32>
    %186 = math.exp %185 : vector<8x32xf32>
    %cst_59 = arith.constant 1.000000e+00 : f32
    %187 = vector.broadcast %cst_59 : f32 to vector<8x32xf32>
    %188 = arith.addf %187, %186 : vector<8x32xf32>
    %189 = arith.divf %187, %188 : vector<8x32xf32>
    %190 = arith.index_cast %178 : i32 to index
    %c0_60 = arith.constant 0 : index
    %191 = vector.load %arg19[%190, %c0_60] : memref<64x32xf32, #tpu.memory_space<vmem>>, vector<8x32xf32>
    %192 = arith.addf %191, %16 : vector<8x32xf32>
    %193 = vector.extract_strided_slice %179 {offsets = [0, 32], sizes = [8, 32], strides = [1, 1]} : vector<8x96xf32> to vector<8x32xf32>
    %194 = arith.addf %192, %193 : vector<8x32xf32>
    %195 = arith.negf %194 : vector<8x32xf32>
    %196 = math.exp %195 : vector<8x32xf32>
    %cst_61 = arith.constant 1.000000e+00 : f32
    %197 = vector.broadcast %cst_61 : f32 to vector<8x32xf32>
    %198 = arith.addf %197, %196 : vector<8x32xf32>
    %199 = arith.divf %197, %198 : vector<8x32xf32>
    %200 = arith.index_cast %178 : i32 to index
    %c0_62 = arith.constant 0 : index
    %201 = vector.load %arg20[%200, %c0_62] : memref<64x32xf32, #tpu.memory_space<vmem>>, vector<8x32xf32>
    %202 = arith.addf %201, %17 : vector<8x32xf32>
    %203 = vector.extract_strided_slice %179 {offsets = [0, 64], sizes = [8, 32], strides = [1, 1]} : vector<8x96xf32> to vector<8x32xf32>
    %204 = vector.broadcast %19 : vector<1x32xf32> to vector<8x32xf32>
    %205 = arith.addf %203, %204 : vector<8x32xf32>
    %206 = arith.mulf %189, %205 : vector<8x32xf32>
    %207 = arith.addf %202, %206 : vector<8x32xf32>
    %208 = math.tanh %207 : vector<8x32xf32>
    %cst_63 = arith.constant 1.000000e+00 : f32
    %209 = vector.broadcast %cst_63 : f32 to vector<8x32xf32>
    %210 = arith.subf %209, %199 : vector<8x32xf32>
    %211 = arith.mulf %210, %208 : vector<8x32xf32>
    %212 = arith.mulf %199, %174 : vector<8x32xf32>
    %213 = arith.addf %211, %212 : vector<8x32xf32>
    %214 = arith.index_cast %178 : i32 to index
    %c0_64 = arith.constant 0 : index
    %215 = vector.load %arg21[%214, %c0_64] : memref<64x32xf32, #tpu.memory_space<vmem>>, vector<8x32xf32>
    tpu.vector_store %arg21[%214, %c0_64], %213 {strides = array<i32>} : memref<64x32xf32, #tpu.memory_space<vmem>>, vector<8x32xf32>,
    %c5_i32 = arith.constant 5 : i32
    %c8_i32_65 = arith.constant 8 : i32
    %216 = arith.muli %c5_i32, %c8_i32_65 : i32
    %217 = tpu.assume_multiple %216, 8 : i32
    %cst_66 = arith.constant dense<0.000000e+00> : vector<8x96xf32>
    %218 = tpu.matmul %213, %18, %cst_66 {dimension_numbers = #tpu.dot_dimension_numbers<[1], [0], [0], [1], [0, 0, 1, 1], [], []>} : vector<8x32xf32>, vector<32x96xf32>, vector<8x96xf32> -> vector<8x96xf32>
    %219 = arith.index_cast %217 : i32 to index
    %c0_67 = arith.constant 0 : index
    %220 = vector.load %arg18[%219, %c0_67] : memref<64x32xf32, #tpu.memory_space<vmem>>, vector<8x32xf32>
    %221 = arith.addf %220, %15 : vector<8x32xf32>
    %222 = vector.extract_strided_slice %218 {offsets = [0, 0], sizes = [8, 32], strides = [1, 1]} : vector<8x96xf32> to vector<8x32xf32>
    %223 = arith.addf %221, %222 : vector<8x32xf32>
    %224 = arith.negf %223 : vector<8x32xf32>
    %225 = math.exp %224 : vector<8x32xf32>
    %cst_68 = arith.constant 1.000000e+00 : f32
    %226 = vector.broadcast %cst_68 : f32 to vector<8x32xf32>
    %227 = arith.addf %226, %225 : vector<8x32xf32>
    %228 = arith.divf %226, %227 : vector<8x32xf32>
    %229 = arith.index_cast %217 : i32 to index
    %c0_69 = arith.constant 0 : index
    %230 = vector.load %arg19[%229, %c0_69] : memref<64x32xf32, #tpu.memory_space<vmem>>, vector<8x32xf32>
    %231 = arith.addf %230, %16 : vector<8x32xf32>
    %232 = vector.extract_strided_slice %218 {offsets = [0, 32], sizes = [8, 32], strides = [1, 1]} : vector<8x96xf32> to vector<8x32xf32>
    %233 = arith.addf %231, %232 : vector<8x32xf32>
    %234 = arith.negf %233 : vector<8x32xf32>
    %235 = math.exp %234 : vector<8x32xf32>
    %cst_70 = arith.constant 1.000000e+00 : f32
    %236 = vector.broadcast %cst_70 : f32 to vector<8x32xf32>
    %237 = arith.addf %236, %235 : vector<8x32xf32>
    %238 = arith.divf %236, %237 : vector<8x32xf32>
    %239 = arith.index_cast %217 : i32 to index
    %c0_71 = arith.constant 0 : index
    %240 = vector.load %arg20[%239, %c0_71] : memref<64x32xf32, #tpu.memory_space<vmem>>, vector<8x32xf32>
    %241 = arith.addf %240, %17 : vector<8x32xf32>
    %242 = vector.extract_strided_slice %218 {offsets = [0, 64], sizes = [8, 32], strides = [1, 1]} : vector<8x96xf32> to vector<8x32xf32>
    %243 = vector.broadcast %19 : vector<1x32xf32> to vector<8x32xf32>
    %244 = arith.addf %242, %243 : vector<8x32xf32>
    %245 = arith.mulf %228, %244 : vector<8x32xf32>
    %246 = arith.addf %241, %245 : vector<8x32xf32>
    %247 = math.tanh %246 : vector<8x32xf32>
    %cst_72 = arith.constant 1.000000e+00 : f32
    %248 = vector.broadcast %cst_72 : f32 to vector<8x32xf32>
    %249 = arith.subf %248, %238 : vector<8x32xf32>
    %250 = arith.mulf %249, %247 : vector<8x32xf32>
    %251 = arith.mulf %238, %213 : vector<8x32xf32>
    %252 = arith.addf %250, %251 : vector<8x32xf32>
    %253 = arith.index_cast %217 : i32 to index
    %c0_73 = arith.constant 0 : index
    %254 = vector.load %arg21[%253, %c0_73] : memref<64x32xf32, #tpu.memory_space<vmem>>, vector<8x32xf32>
    tpu.vector_store %arg21[%253, %c0_73], %252 {strides = array<i32>} : memref<64x32xf32, #tpu.memory_space<vmem>>, vector<8x32xf32>,
    %c6_i32 = arith.constant 6 : i32
    %c8_i32_74 = arith.constant 8 : i32
    %255 = arith.muli %c6_i32, %c8_i32_74 : i32
    %256 = tpu.assume_multiple %255, 8 : i32
    %cst_75 = arith.constant dense<0.000000e+00> : vector<8x96xf32>
    %257 = tpu.matmul %252, %18, %cst_75 {dimension_numbers = #tpu.dot_dimension_numbers<[1], [0], [0], [1], [0, 0, 1, 1], [], []>} : vector<8x32xf32>, vector<32x96xf32>, vector<8x96xf32> -> vector<8x96xf32>
    %258 = arith.index_cast %256 : i32 to index
    %c0_76 = arith.constant 0 : index
    %259 = vector.load %arg18[%258, %c0_76] : memref<64x32xf32, #tpu.memory_space<vmem>>, vector<8x32xf32>
    %260 = arith.addf %259, %15 : vector<8x32xf32>
    %261 = vector.extract_strided_slice %257 {offsets = [0, 0], sizes = [8, 32], strides = [1, 1]} : vector<8x96xf32> to vector<8x32xf32>
    %262 = arith.addf %260, %261 : vector<8x32xf32>
    %263 = arith.negf %262 : vector<8x32xf32>
    %264 = math.exp %263 : vector<8x32xf32>
    %cst_77 = arith.constant 1.000000e+00 : f32
    %265 = vector.broadcast %cst_77 : f32 to vector<8x32xf32>
    %266 = arith.addf %265, %264 : vector<8x32xf32>
    %267 = arith.divf %265, %266 : vector<8x32xf32>
    %268 = arith.index_cast %256 : i32 to index
    %c0_78 = arith.constant 0 : index
    %269 = vector.load %arg19[%268, %c0_78] : memref<64x32xf32, #tpu.memory_space<vmem>>, vector<8x32xf32>
    %270 = arith.addf %269, %16 : vector<8x32xf32>
    %271 = vector.extract_strided_slice %257 {offsets = [0, 32], sizes = [8, 32], strides = [1, 1]} : vector<8x96xf32> to vector<8x32xf32>
    %272 = arith.addf %270, %271 : vector<8x32xf32>
    %273 = arith.negf %272 : vector<8x32xf32>
    %274 = math.exp %273 : vector<8x32xf32>
    %cst_79 = arith.constant 1.000000e+00 : f32
    %275 = vector.broadcast %cst_79 : f32 to vector<8x32xf32>
    %276 = arith.addf %275, %274 : vector<8x32xf32>
    %277 = arith.divf %275, %276 : vector<8x32xf32>
    %278 = arith.index_cast %256 : i32 to index
    %c0_80 = arith.constant 0 : index
    %279 = vector.load %arg20[%278, %c0_80] : memref<64x32xf32, #tpu.memory_space<vmem>>, vector<8x32xf32>
    %280 = arith.addf %279, %17 : vector<8x32xf32>
    %281 = vector.extract_strided_slice %257 {offsets = [0, 64], sizes = [8, 32], strides = [1, 1]} : vector<8x96xf32> to vector<8x32xf32>
    %282 = vector.broadcast %19 : vector<1x32xf32> to vector<8x32xf32>
    %283 = arith.addf %281, %282 : vector<8x32xf32>
    %284 = arith.mulf %267, %283 : vector<8x32xf32>
    %285 = arith.addf %280, %284 : vector<8x32xf32>
    %286 = math.tanh %285 : vector<8x32xf32>
    %cst_81 = arith.constant 1.000000e+00 : f32
    %287 = vector.broadcast %cst_81 : f32 to vector<8x32xf32>
    %288 = arith.subf %287, %277 : vector<8x32xf32>
    %289 = arith.mulf %288, %286 : vector<8x32xf32>
    %290 = arith.mulf %277, %252 : vector<8x32xf32>
    %291 = arith.addf %289, %290 : vector<8x32xf32>
    %292 = arith.index_cast %256 : i32 to index
    %c0_82 = arith.constant 0 : index
    %293 = vector.load %arg21[%292, %c0_82] : memref<64x32xf32, #tpu.memory_space<vmem>>, vector<8x32xf32>
    tpu.vector_store %arg21[%292, %c0_82], %291 {strides = array<i32>} : memref<64x32xf32, #tpu.memory_space<vmem>>, vector<8x32xf32>,
    %c7_i32 = arith.constant 7 : i32
    %c8_i32_83 = arith.constant 8 : i32
    %294 = arith.muli %c7_i32, %c8_i32_83 : i32
    %295 = tpu.assume_multiple %294, 8 : i32
    %cst_84 = arith.constant dense<0.000000e+00> : vector<8x96xf32>
    %296 = tpu.matmul %291, %18, %cst_84 {dimension_numbers = #tpu.dot_dimension_numbers<[1], [0], [0], [1], [0, 0, 1, 1], [], []>} : vector<8x32xf32>, vector<32x96xf32>, vector<8x96xf32> -> vector<8x96xf32>
    %297 = arith.index_cast %295 : i32 to index
    %c0_85 = arith.constant 0 : index
    %298 = vector.load %arg18[%297, %c0_85] : memref<64x32xf32, #tpu.memory_space<vmem>>, vector<8x32xf32>
    %299 = arith.addf %298, %15 : vector<8x32xf32>
    %300 = vector.extract_strided_slice %296 {offsets = [0, 0], sizes = [8, 32], strides = [1, 1]} : vector<8x96xf32> to vector<8x32xf32>
    %301 = arith.addf %299, %300 : vector<8x32xf32>
    %302 = arith.negf %301 : vector<8x32xf32>
    %303 = math.exp %302 : vector<8x32xf32>
    %cst_86 = arith.constant 1.000000e+00 : f32
    %304 = vector.broadcast %cst_86 : f32 to vector<8x32xf32>
    %305 = arith.addf %304, %303 : vector<8x32xf32>
    %306 = arith.divf %304, %305 : vector<8x32xf32>
    %307 = arith.index_cast %295 : i32 to index
    %c0_87 = arith.constant 0 : index
    %308 = vector.load %arg19[%307, %c0_87] : memref<64x32xf32, #tpu.memory_space<vmem>>, vector<8x32xf32>
    %309 = arith.addf %308, %16 : vector<8x32xf32>
    %310 = vector.extract_strided_slice %296 {offsets = [0, 32], sizes = [8, 32], strides = [1, 1]} : vector<8x96xf32> to vector<8x32xf32>
    %311 = arith.addf %309, %310 : vector<8x32xf32>
    %312 = arith.negf %311 : vector<8x32xf32>
    %313 = math.exp %312 : vector<8x32xf32>
    %cst_88 = arith.constant 1.000000e+00 : f32
    %314 = vector.broadcast %cst_88 : f32 to vector<8x32xf32>
    %315 = arith.addf %314, %313 : vector<8x32xf32>
    %316 = arith.divf %314, %315 : vector<8x32xf32>
    %317 = arith.index_cast %295 : i32 to index
    %c0_89 = arith.constant 0 : index
    %318 = vector.load %arg20[%317, %c0_89] : memref<64x32xf32, #tpu.memory_space<vmem>>, vector<8x32xf32>
    %319 = arith.addf %318, %17 : vector<8x32xf32>
    %320 = vector.extract_strided_slice %296 {offsets = [0, 64], sizes = [8, 32], strides = [1, 1]} : vector<8x96xf32> to vector<8x32xf32>
    %321 = vector.broadcast %19 : vector<1x32xf32> to vector<8x32xf32>
    %322 = arith.addf %320, %321 : vector<8x32xf32>
    %323 = arith.mulf %306, %322 : vector<8x32xf32>
    %324 = arith.addf %319, %323 : vector<8x32xf32>
    %325 = math.tanh %324 : vector<8x32xf32>
    %cst_90 = arith.constant 1.000000e+00 : f32
    %326 = vector.broadcast %cst_90 : f32 to vector<8x32xf32>
    %327 = arith.subf %326, %316 : vector<8x32xf32>
    %328 = arith.mulf %327, %325 : vector<8x32xf32>
    %329 = arith.mulf %316, %291 : vector<8x32xf32>
    %330 = arith.addf %328, %329 : vector<8x32xf32>
    %331 = arith.index_cast %295 : i32 to index
    %c0_91 = arith.constant 0 : index
    %332 = vector.load %arg21[%331, %c0_91] : memref<64x32xf32, #tpu.memory_space<vmem>>, vector<8x32xf32>
    tpu.vector_store %arg21[%331, %c0_91], %330 {strides = array<i32>} : memref<64x32xf32, #tpu.memory_space<vmem>>, vector<8x32xf32>,
    %c8_i32_92 = arith.constant 8 : i32
    %c0_93 = arith.constant 0 : index
    %c0_94 = arith.constant 0 : index
    %333 = vector.load %arg21[%c0_93, %c0_94] : memref<64x32xf32, #tpu.memory_space<vmem>>, vector<64x32xf32>
    %c0_95 = arith.constant 0 : index
    %c0_96 = arith.constant 0 : index
    %334 = vector.load %arg10[%c0_95, %c0_96] : memref<32x64xf32, #tpu.memory_space<vmem>>, vector<32x64xf32>
    %cst_97 = arith.constant dense<0.000000e+00> : vector<8x64xf32>
    %335 = tpu.matmul %0, %334, %cst_97 {dimension_numbers = #tpu.dot_dimension_numbers<[1], [0], [0], [1], [0, 0, 1, 1], [], []>} : vector<8x32xf32>, vector<32x64xf32>, vector<8x64xf32> -> vector<8x64xf32>
    %c0_98 = arith.constant 0 : index
    %c0_99 = arith.constant 0 : index
    %336 = vector.load %arg11[%c0_98, %c0_99] : memref<1x64xf32, #tpu.memory_space<vmem>>, vector<1x64xf32>
    %337 = vector.broadcast %336 : vector<1x64xf32> to vector<8x64xf32>
    %338 = arith.addf %335, %337 : vector<8x64xf32>
    %c0_100 = arith.constant 0 : index
    %c0_101 = arith.constant 0 : index
    %339 = vector.load %arg9[%c0_100, %c0_101] : memref<32x64xf32, #tpu.memory_space<vmem>>, vector<32x64xf32>
    %cst_102 = arith.constant dense<0.000000e+00> : vector<64x64xf32>
    %340 = tpu.matmul %333, %339, %cst_102 {dimension_numbers = #tpu.dot_dimension_numbers<[1], [0], [0], [1], [0, 0, 1, 1], [], []>} : vector<64x32xf32>, vector<32x64xf32>, vector<64x64xf32> -> vector<64x64xf32>
    %341 = vector.shape_cast %340 : vector<64x64xf32> to vector<8x8x64xf32>
    %342 = vector.shape_cast %338 : vector<8x64xf32> to vector<1x8x64xf32>
    %343 = vector.broadcast %342 : vector<1x8x64xf32> to vector<8x8x64xf32>
    %344 = arith.addf %341, %343 : vector<8x8x64xf32>
    %345 = math.tanh %344 : vector<8x8x64xf32>
    %c0_103 = arith.constant 0 : index
    %c0_104 = arith.constant 0 : index
    %346 = vector.load %arg12[%c0_103, %c0_104] : memref<1x64xf32, #tpu.memory_space<vmem>>, vector<1x64xf32>
    %347 = vector.shape_cast %346 : vector<1x64xf32> to vector<1x1x64xf32>
    %348 = vector.broadcast %347 : vector<1x1x64xf32> to vector<8x8x64xf32>
    %349 = arith.mulf %345, %348 : vector<8x8x64xf32>
    %350 = vector.extract_strided_slice %349 {offsets = [0, 0, 0], sizes = [8, 8, 32], strides = [1, 1, 1]} : vector<8x8x64xf32> to vector<8x8x32xf32>
    %cst_105 = arith.constant dense<0.000000e+00> : vector<8x8xf32>
    %351 = vector.multi_reduction <add>, %350, %cst_105 [2] : vector<8x8x32xf32> to vector<8x8xf32>
    %352 = vector.shape_cast %351 : vector<8x8xf32> to vector<8x8x1xf32>
    %353 = vector.extract_strided_slice %349 {offsets = [0, 0, 32], sizes = [8, 8, 32], strides = [1, 1, 1]} : vector<8x8x64xf32> to vector<8x8x32xf32>
    %cst_106 = arith.constant dense<0.000000e+00> : vector<8x8xf32>
    %354 = vector.multi_reduction <add>, %353, %cst_106 [2] : vector<8x8x32xf32> to vector<8x8xf32>
    %355 = vector.shape_cast %354 : vector<8x8xf32> to vector<8x8x1xf32>
    %c0_107 = arith.constant 0 : index
    %c0_108 = arith.constant 0 : index
    %c0_109 = arith.constant 0 : index
    %356 = vector.load %arg3[%c0_107, %c0_108, %c0_109] : memref<8x8x1xf32, #tpu.memory_space<vmem>>, vector<8x8x1xf32>
    %357 = arith.addf %352, %356 : vector<8x8x1xf32>
    %cst_110 = arith.constant dense<0xFF800000> : vector<8x1xf32>
    %358 = vector.multi_reduction <maximumf>, %357, %cst_110 [0] : vector<8x8x1xf32> to vector<8x1xf32>
    %359 = vector.shape_cast %358 : vector<8x1xf32> to vector<1x8x1xf32>
    %360 = vector.broadcast %359 : vector<1x8x1xf32> to vector<8x8x1xf32>
    %361 = arith.subf %357, %360 : vector<8x8x1xf32>
    %362 = math.exp %361 : vector<8x8x1xf32>
    %cst_111 = arith.constant dense<0.000000e+00> : vector<8x1xf32>
    %363 = vector.multi_reduction <add>, %362, %cst_111 [0] : vector<8x8x1xf32> to vector<8x1xf32>
    %364 = vector.shape_cast %363 : vector<8x1xf32> to vector<1x8x1xf32>
    %365 = vector.broadcast %364 : vector<1x8x1xf32> to vector<8x8x1xf32>
    %366 = arith.divf %362, %365 : vector<8x8x1xf32>
    %367 = arith.addf %355, %356 : vector<8x8x1xf32>
    %cst_112 = arith.constant dense<0xFF800000> : vector<8x1xf32>
    %368 = vector.multi_reduction <maximumf>, %367, %cst_112 [0] : vector<8x8x1xf32> to vector<8x1xf32>
    %369 = vector.shape_cast %368 : vector<8x1xf32> to vector<1x8x1xf32>
    %370 = vector.broadcast %369 : vector<1x8x1xf32> to vector<8x8x1xf32>
    %371 = arith.subf %367, %370 : vector<8x8x1xf32>
    %372 = math.exp %371 : vector<8x8x1xf32>
    %cst_113 = arith.constant dense<0.000000e+00> : vector<8x1xf32>
    %373 = vector.multi_reduction <add>, %372, %cst_113 [0] : vector<8x8x1xf32> to vector<8x1xf32>
    %374 = vector.shape_cast %373 : vector<8x1xf32> to vector<1x8x1xf32>
    %375 = vector.broadcast %374 : vector<1x8x1xf32> to vector<8x8x1xf32>
    %376 = arith.divf %372, %375 : vector<8x8x1xf32>
    %377 = vector.shape_cast %333 : vector<64x32xf32> to vector<8x8x32xf32>
    %378 = vector.broadcast %366 : vector<8x8x1xf32> to vector<8x8x32xf32>
    %379 = arith.mulf %378, %377 : vector<8x8x32xf32>
    %cst_114 = arith.constant dense<0.000000e+00> : vector<8x32xf32>
    %380 = vector.multi_reduction <add>, %379, %cst_114 [0] : vector<8x8x32xf32> to vector<8x32xf32>
    %381 = vector.broadcast %376 : vector<8x8x1xf32> to vector<8x8x32xf32>
    %382 = arith.mulf %381, %377 : vector<8x8x32xf32>
    %cst_115 = arith.constant dense<0.000000e+00> : vector<8x32xf32>
    %383 = vector.multi_reduction <add>, %382, %cst_115 [0] : vector<8x8x32xf32> to vector<8x32xf32>
    %384 = arith.mulf %366, %366 : vector<8x8x1xf32>
    %cst_116 = arith.constant dense<0.000000e+00> : vector<8x1xf32>
    %385 = vector.multi_reduction <add>, %384, %cst_116 [0] : vector<8x8x1xf32> to vector<8x1xf32>
    %386 = arith.mulf %376, %376 : vector<8x8x1xf32>
    %cst_117 = arith.constant dense<0.000000e+00> : vector<8x1xf32>
    %387 = vector.multi_reduction <add>, %386, %cst_117 [0] : vector<8x8x1xf32> to vector<8x1xf32>
    %388 = arith.mulf %366, %376 : vector<8x8x1xf32>
    %cst_118 = arith.constant dense<0.000000e+00> : vector<8x1xf32>
    %389 = vector.multi_reduction <add>, %388, %cst_118 [0] : vector<8x8x1xf32> to vector<8x1xf32>
    %390 = arith.mulf %385, %385 : vector<8x1xf32>
    %cst_119 = arith.constant 2.000000e+00 : f32
    %391 = vector.broadcast %cst_119 : f32 to vector<8x1xf32>
    %392 = arith.mulf %391, %389 : vector<8x1xf32>
    %393 = arith.mulf %392, %389 : vector<8x1xf32>
    %394 = arith.addf %390, %393 : vector<8x1xf32>
    %395 = arith.mulf %387, %387 : vector<8x1xf32>
    %396 = arith.addf %394, %395 : vector<8x1xf32>
    %397 = arith.addf %385, %387 : vector<8x1xf32>
    %cst_120 = arith.constant 2.000000e+00 : f32
    %398 = vector.broadcast %cst_120 : f32 to vector<8x1xf32>
    %399 = arith.mulf %398, %397 : vector<8x1xf32>
    %400 = arith.subf %396, %399 : vector<8x1xf32>
    %cst_121 = arith.constant 8.000000e+00 : f32
    %401 = vector.broadcast %cst_121 : f32 to vector<8x1xf32>
    %402 = arith.addf %400, %401 : vector<8x1xf32>
    %c0_122 = arith.constant 0 : index
    %c0_123 = arith.constant 0 : index
    %403 = vector.load %arg17[%c0_122, %c0_123] : memref<8x1xf32, #tpu.memory_space<vmem>>, vector<8x1xf32>
    tpu.vector_store %arg17[%c0_122, %c0_123], %402 {strides = array<i32>} : memref<8x1xf32, #tpu.memory_space<vmem>>, vector<8x1xf32>,
    %c0_124 = arith.constant 0 : index
    %c0_125 = arith.constant 0 : index
    %404 = vector.load %arg13[%c0_124, %c0_125] : memref<1x32xf32, #tpu.memory_space<vmem>>, vector<1x32xf32>
    %405 = vector.broadcast %404 : vector<1x32xf32> to vector<8x32xf32>
    %406 = arith.mulf %380, %405 : vector<8x32xf32>
    %cst_126 = arith.constant dense<0.000000e+00> : vector<8xf32>
    %407 = vector.multi_reduction <add>, %406, %cst_126 [1] : vector<8x32xf32> to vector<8xf32>
    %408 = vector.shape_cast %407 : vector<8xf32> to vector<8x1xf32>
    %c0_127 = arith.constant 0 : index
    %c0_128 = arith.constant 0 : index
    %409 = vector.load %arg14[%c0_127, %c0_128] : memref<1x32xf32, #tpu.memory_space<vmem>>, vector<1x32xf32>
    %410 = vector.broadcast %409 : vector<1x32xf32> to vector<8x32xf32>
    %411 = arith.mulf %383, %410 : vector<8x32xf32>
    %cst_129 = arith.constant dense<0.000000e+00> : vector<8xf32>
    %412 = vector.multi_reduction <add>, %411, %cst_129 [1] : vector<8x32xf32> to vector<8xf32>
    %413 = vector.shape_cast %412 : vector<8xf32> to vector<8x1xf32>
    %414 = tpu.concatenate %408, %413 in 1 : vector<8x1xf32>, vector<8x1xf32> -> vector<8x2xf32>
    %c0_130 = arith.constant 0 : index
    %c0_131 = arith.constant 0 : index
    %415 = vector.load %arg15[%c0_130, %c0_131] : memref<1x2xf32, #tpu.memory_space<vmem>>, vector<1x2xf32>
    %416 = vector.broadcast %415 : vector<1x2xf32> to vector<8x2xf32>
    %417 = arith.addf %414, %416 : vector<8x2xf32>
    %c0_132 = arith.constant 0 : index
    %c0_133 = arith.constant 0 : index
    %418 = vector.load %arg16[%c0_132, %c0_133] : memref<8x2xf32, #tpu.memory_space<vmem>>, vector<8x2xf32>
    tpu.vector_store %arg16[%c0_132, %c0_133], %417 {strides = array<i32>} : memref<8x2xf32, #tpu.memory_space<vmem>>, vector<8x2xf32>,
    return
  }
  func.func @transform_0(%arg0: i32) -> (i32, i32) {
    %c0_i32 = arith.constant 0 : i32
    %c0_i32_0 = arith.constant 0 : i32
    return %arg0, %c0_i32 : i32, i32
  }
  func.func @transform_1(%arg0: i32) -> (i32, i32) {
    %c0_i32 = arith.constant 0 : i32
    %c0_i32_0 = arith.constant 0 : i32
    return %arg0, %c0_i32 : i32, i32
  }
  func.func @transform_2(%arg0: i32) -> (i32, i32, i32) {
    %c0_i32 = arith.constant 0 : i32
    %c0_i32_0 = arith.constant 0 : i32
    %c0_i32_1 = arith.constant 0 : i32
    return %c0_i32, %arg0, %c0_i32_0 : i32, i32, i32
  }
  func.func @transform_3(%arg0: i32) -> (i32, i32) {
    %c0_i32 = arith.constant 0 : i32
    %c0_i32_0 = arith.constant 0 : i32
    %c0_i32_1 = arith.constant 0 : i32
    return %c0_i32, %c0_i32_0 : i32, i32
  }
  func.func @transform_4(%arg0: i32) -> (i32, i32) {
    %c0_i32 = arith.constant 0 : i32
    %c0_i32_0 = arith.constant 0 : i32
    %c0_i32_1 = arith.constant 0 : i32
    return %c0_i32, %c0_i32_0 : i32, i32
  }
  func.func @transform_5(%arg0: i32) -> (i32, i32) {
    %c0_i32 = arith.constant 0 : i32
    %c0_i32_0 = arith.constant 0 : i32
    %c0_i32_1 = arith.constant 0 : i32
    return %c0_i32, %c0_i32_0 : i32, i32
  }
  func.func @transform_6(%arg0: i32) -> (i32, i32) {
    %c0_i32 = arith.constant 0 : i32
    %c0_i32_0 = arith.constant 0 : i32
    %c0_i32_1 = arith.constant 0 : i32
    return %c0_i32, %c0_i32_0 : i32, i32
  }
  func.func @transform_7(%arg0: i32) -> (i32, i32) {
    %c0_i32 = arith.constant 0 : i32
    %c0_i32_0 = arith.constant 0 : i32
    %c0_i32_1 = arith.constant 0 : i32
    return %c0_i32, %c0_i32_0 : i32, i32
  }
  func.func @transform_8(%arg0: i32) -> (i32, i32) {
    %c0_i32 = arith.constant 0 : i32
    %c0_i32_0 = arith.constant 0 : i32
    %c0_i32_1 = arith.constant 0 : i32
    return %c0_i32, %c0_i32_0 : i32, i32
  }
  func.func @transform_9(%arg0: i32) -> (i32, i32) {
    %c0_i32 = arith.constant 0 : i32
    %c0_i32_0 = arith.constant 0 : i32
    %c0_i32_1 = arith.constant 0 : i32
    return %c0_i32, %c0_i32_0 : i32, i32
  }
  func.func @transform_10(%arg0: i32) -> (i32, i32) {
    %c0_i32 = arith.constant 0 : i32
    %c0_i32_0 = arith.constant 0 : i32
    %c0_i32_1 = arith.constant 0 : i32
    return %c0_i32, %c0_i32_0 : i32, i32
  }
  func.func @transform_11(%arg0: i32) -> (i32, i32) {
    %c0_i32 = arith.constant 0 : i32
    %c0_i32_0 = arith.constant 0 : i32
    %c0_i32_1 = arith.constant 0 : i32
    return %c0_i32, %c0_i32_0 : i32, i32
  }
  func.func @transform_12(%arg0: i32) -> (i32, i32) {
    %c0_i32 = arith.constant 0 : i32
    %c0_i32_0 = arith.constant 0 : i32
    %c0_i32_1 = arith.constant 0 : i32
    return %c0_i32, %c0_i32_0 : i32, i32
  }
  func.func @transform_13(%arg0: i32) -> (i32, i32) {
    %c0_i32 = arith.constant 0 : i32
    %c0_i32_0 = arith.constant 0 : i32
    %c0_i32_1 = arith.constant 0 : i32
    return %c0_i32, %c0_i32_0 : i32, i32
  }
  func.func @transform_14(%arg0: i32) -> (i32, i32) {
    %c0_i32 = arith.constant 0 : i32
    %c0_i32_0 = arith.constant 0 : i32
    %c0_i32_1 = arith.constant 0 : i32
    return %c0_i32, %c0_i32_0 : i32, i32
  }
  func.func @transform_15(%arg0: i32) -> (i32, i32) {
    %c0_i32 = arith.constant 0 : i32
    %c0_i32_0 = arith.constant 0 : i32
    return %arg0, %c0_i32 : i32, i32
  }
  func.func @transform_16(%arg0: i32) -> (i32, i32) {
    %c0_i32 = arith.constant 0 : i32
    %c0_i32_0 = arith.constant 0 : i32
    return %arg0, %c0_i32 : i32, i32
  }
}

</mosaic_0001>

<llo_original>
// kernel: tpu_custom_call.1
$region0: #{tpu_custom_call.1}
  #allocation0 [shape = 'u32[]', space=smem, size = 0x4, offset = 0x4, fixed_abs, tag = 'smem constant byte address 0x4 - core index']
  #allocation1 [shape = 'u32[144,128]{1,0:T(1,128)}', space=vmem, size = 0x12000, scoped, tag = 'internal scratch']
  #allocation2 [shape = 'f32[64,32]{1,0:T(8,128)}', space=vmem, size = 0x8000, scoped, tag = 'scratch operand']
  #allocation3 [shape = 'f32[64,32]{1,0:T(8,128)}', space=vmem, size = 0x8000, scoped, tag = 'scratch operand']
  #allocation4 [shape = 'f32[64,32]{1,0:T(8,128)}', space=vmem, size = 0x8000, scoped, tag = 'scratch operand']
  #allocation5 [shape = 'f32[64,32]{1,0:T(8,128)}', space=vmem, size = 0x8000, scoped, tag = 'scratch operand']
  %s0 = inlined_call_operand.vmem [shape: f32[64,32], index: 0, kind: input, shape index: {}]
  %s1 = inlined_call_operand.hbm [shape: f32[8,32], index: 1, kind: input, shape index: {}]
  %s2 = inlined_call_operand.vmem [shape: f32[8,8,1], index: 2, kind: input, shape index: {}]
  %s3 = inlined_call_operand.vmem [shape: f32[32,96], index: 3, kind: input, shape index: {}]
  %s4 = inlined_call_operand.vmem [shape: f32[32,96], index: 4, kind: input, shape index: {}]
  %s5 = inlined_call_operand.vmem [shape: f32[1,96], index: 5, kind: input, shape index: {}]
  %s6 = inlined_call_operand.vmem [shape: f32[32,96], index: 6, kind: input, shape index: {}]
  %s7 = inlined_call_operand.vmem [shape: f32[1,32], index: 7, kind: input, shape index: {}]
  %s8 = inlined_call_operand.vmem [shape: f32[32,64], index: 8, kind: input, shape index: {}]
  %s9 = inlined_call_operand.vmem [shape: f32[32,64], index: 9, kind: input, shape index: {}]
  %s10 = inlined_call_operand.vmem [shape: f32[1,64], index: 10, kind: input, shape index: {}]
  %s11 = inlined_call_operand.vmem [shape: f32[1,64], index: 11, kind: input, shape index: {}]
  %s12 = inlined_call_operand.vmem [shape: f32[1,32], index: 12, kind: input, shape index: {}]
  %s13 = inlined_call_operand.vmem [shape: f32[1,32], index: 13, kind: input, shape index: {}]
  %s14 = inlined_call_operand.vmem [shape: f32[1,2], index: 14, kind: input, shape index: {}]
  %s15 = inlined_call_operand.vmem [shape: f32[8,2], index: 15, kind: output, shape index: {0}]
  %s16 = inlined_call_operand.vmem [shape: f32[8,1], index: 16, kind: output, shape index: {1}]
  %17 = xla_tuple %s15, %s16
  %s18 = sld [smem:[#allocation0]]
  $region82: #{tpu_custom_call.1} parent=0
    _
  %s20 = ssub.s32 1, %s18
  %s21 = scalar_select 0, %s20, %s18
  $region1: #{tpu_custom_call.1} parent=0
    #allocation6 [shape = 'u8[4096]{0}', space=vmem, size = 0x1000, scoped, tag = 'input window, operand 1, single buffered']
    #allocation7 [shape = 's32[1]{0}', space=sflag, size = 0x4, scoped, tag = 'scoped memory for tpu_custom_call.1']
    %22 = vsyncpa [#allocation7], 0
    // Predicated region
    $region2: #{tpu_custom_call.1} parent=1 // pred_check
      _
    $region3: #{tpu_custom_call.1} parent=1 // pred_check_branch
      %24 = sbr.rel (0) target = $region5
    $region4: #{tpu_custom_call.1} parent=1 // pred_region
      _
    $region5: #{tpu_custom_call.1} parent=1 // pred_fallthru
      _
    // Predicated region
    $region6: #{tpu_custom_call.1} parent=1 // pred_check
      _
    $region7: #{tpu_custom_call.1} parent=1 // pred_check_branch
      %26 = sbr.rel (0) target = $region9
    $region8: #{tpu_custom_call.1} parent=1 // pred_region
      %s28 = ssub.s32 128, 128
      %29 = vsyncadd [#allocation7], %s28
      %s31 = sshll.u32 [#allocation6], 4
      %s32 = int_to_ptr.vmem [resolvable:$true] %s31
      %34 = dma.hbm_to_vmem [thread:$0]  %s1, 128, %s32, [#allocation7]
    $region9: #{tpu_custom_call.1} parent=1 // pred_fallthru
      _
    // Predicated region
    $region10: #{tpu_custom_call.1} parent=1 // pred_check
      _
    $region11: #{tpu_custom_call.1} parent=1 // pred_check_branch
      %36 = sbr.rel (0) target = $region13
    $region12: #{tpu_custom_call.1} parent=1 // pred_region
      _
    $region13: #{tpu_custom_call.1} parent=1 // pred_fallthru
      _
    // Predicated region
    $region14: #{tpu_custom_call.1} parent=1 // pred_check
      _
    $region15: #{tpu_custom_call.1} parent=1 // pred_check_branch
      %38 = sbr.rel (0) target = $region17
    $region16: #{tpu_custom_call.1} parent=1 // pred_region
      _
    $region17: #{tpu_custom_call.1} parent=1 // pred_fallthru
      _
    // Predicated region
    $region18: #{tpu_custom_call.1} parent=1 // pred_check
      _
    $region19: #{tpu_custom_call.1} parent=1 // pred_check_branch
      %40 = sbr.rel (0) target = $region21
    $region20: #{tpu_custom_call.1} parent=1 // pred_region
      _
    $region21: #{tpu_custom_call.1} parent=1 // pred_fallthru
      _
    // Predicated region
    $region22: #{tpu_custom_call.1} parent=1 // pred_check
      _
    $region23: #{tpu_custom_call.1} parent=1 // pred_check_branch
      %42 = sbr.rel (0) target = $region25
    $region24: #{tpu_custom_call.1} parent=1 // pred_region
      _
    $region25: #{tpu_custom_call.1} parent=1 // pred_fallthru
      _
    // Predicated region
    $region26: #{tpu_custom_call.1} parent=1 // pred_check
      _
    $region27: #{tpu_custom_call.1} parent=1 // pred_check_branch
      %44 = sbr.rel (0) target = $region29
    $region28: #{tpu_custom_call.1} parent=1 // pred_region
      _
    $region29: #{tpu_custom_call.1} parent=1 // pred_fallthru
      _
    // Predicated region
    $region30: #{tpu_custom_call.1} parent=1 // pred_check
      _
    $region31: #{tpu_custom_call.1} parent=1 // pred_check_branch
      %46 = sbr.rel (0) target = $region33
    $region32: #{tpu_custom_call.1} parent=1 // pred_region
      _
    $region33: #{tpu_custom_call.1} parent=1 // pred_fallthru
      _
    // Predicated region
    $region34: #{tpu_custom_call.1} parent=1 // pred_check
      _
    $region35: #{tpu_custom_call.1} parent=1 // pred_check_branch
      %48 = sbr.rel (0) target = $region37
    $region36: #{tpu_custom_call.1} parent=1 // pred_region
      _
    $region37: #{tpu_custom_call.1} parent=1 // pred_fallthru
      _
    // Predicated region
    $region38: #{tpu_custom_call.1} parent=1 // pred_check
      _
    $region39: #{tpu_custom_call.1} parent=1 // pred_check_branch
      %50 = sbr.rel (0) target = $region41
    $region40: #{tpu_custom_call.1} parent=1 // pred_region
      _
    $region41: #{tpu_custom_call.1} parent=1 // pred_fallthru
      _
    // Predicated region
    $region42: #{tpu_custom_call.1} parent=1 // pred_check
      _
    $region43: #{tpu_custom_call.1} parent=1 // pred_check_branch
      %52 = sbr.rel (0) target = $region45
    $region44: #{tpu_custom_call.1} parent=1 // pred_region
      _
    $region45: #{tpu_custom_call.1} parent=1 // pred_fallthru
      _
    // Predicated region
    $region46: #{tpu_custom_call.1} parent=1 // pred_check
      _
    $region47: #{tpu_custom_call.1} parent=1 // pred_check_branch
      %54 = sbr.rel (0) target = $region49
    $region48: #{tpu_custom_call.1} parent=1 // pred_region
      _
    $region49: #{tpu_custom_call.1} parent=1 // pred_fallthru
      _
    // Predicated region
    $region50: #{tpu_custom_call.1} parent=1 // pred_check
      _
    $region51: #{tpu_custom_call.1} parent=1 // pred_check_branch
      %56 = sbr.rel (0) target = $region53
    $region52: #{tpu_custom_call.1} parent=1 // pred_region
      _
    $region53: #{tpu_custom_call.1} parent=1 // pred_fallthru
      _
    // Predicated region
    $region54: #{tpu_custom_call.1} parent=1 // pred_check
      _
    $region55: #{tpu_custom_call.1} parent=1 // pred_check_branch
      %58 = sbr.rel (0) target = $region57
    $region56: #{tpu_custom_call.1} parent=1 // pred_region
      _
    $region57: #{tpu_custom_call.1} parent=1 // pred_fallthru
      _
    // Predicated region
    $region58: #{tpu_custom_call.1} parent=1 // pred_check
      _
    $region59: #{tpu_custom_call.1} parent=1 // pred_check_branch
      %60 = sbr.rel (0) target = $region61
    $region60: #{tpu_custom_call.1} parent=1 // pred_region
      _
    $region61: #{tpu_custom_call.1} parent=1 // pred_fallthru
      _
    // Predicated region
    $region62: #{tpu_custom_call.1} parent=1 // pred_check
      _
    $region63: #{tpu_custom_call.1} parent=1 // pred_check_branch
      %62 = sbr.rel (0) target = $region65
    $region64: #{tpu_custom_call.1} parent=1 // pred_region
      %63 = dma.done [#allocation7], 128
    $region65: #{tpu_custom_call.1} parent=1 // pred_fallthru
      _
    %v64 = vld [vmem:[#allocation6] sm:$0xff]
    %v65 = vld [vmem:[%s0] sm:$0xff]
    %v66 = vld [vmem:[%s0 + $0x8] sm:$0xff]
    %v67 = vld [vmem:[%s0 + $0x10] sm:$0xff]
    %v68 = vld [vmem:[%s0 + $0x18] sm:$0xff]
    %v69 = vld [vmem:[%s0 + $0x20] sm:$0xff]
    %v70 = vld [vmem:[%s0 + $0x28] sm:$0xff]
    %v71 = vld [vmem:[%s0 + $0x30] sm:$0xff]
    %v72 = vld [vmem:[%s0 + $0x38] sm:$0xff]
    %v73 = vld [vmem:[%s3] sm:$0xff]
    %v74 = vld [vmem:[%s3 + $0x8] sm:$0xff]
    %v75 = vld [vmem:[%s3 + $0x10] sm:$0xff]
    %v76 = vld [vmem:[%s3 + $0x18] sm:$0xff]
    %vm77 = vcmask 261120
    %v79 = vsel %vm77, %v65, 0
    %v82 = vsel %vm77, %v66, 0
    %v85 = vsel %vm77, %v67, 0
    %v88 = vsel %vm77, %v68, 0
    %v91 = vsel %vm77, %v69, 0
    %v94 = vsel %vm77, %v70, 0
    %v97 = vsel %vm77, %v71, 0
    %v100 = vsel %vm77, %v72, 0
    %102 = vmatprep.subr.mxu0 0.0
    %103 = vmatpush1.msra.mxu0 0.0
    %104 = vmatprep.subr.mxu0 0.0
    %105 = vmatpush1.msra.mxu0 0.0
    %106 = vmatprep.subr.mxu0 0.0
    %107 = vmatpush1.msra.mxu0 0.0
    %108 = vmatprep.subr.mxu0 0.0
    %109 = vmatpush1.msra.mxu0 0.0
    %110 = vmatprep.subr.mxu0 0.0
    %111 = vmatpush1.msra.mxu0 0.0
    %112 = vmatprep.subr.mxu0 0.0
    %113 = vmatpush1.msra.mxu0 0.0
    %114 = vmatprep.subr.mxu0 0.0
    %115 = vmatpush1.msra.mxu0 0.0
    %116 = vmatprep.subr.mxu0 0.0
    %117 = vmatpush1.msra.mxu0 0.0
    %118 = vmatprep.subr.mxu0 0.0
    %119 = vmatpush1.msra.mxu0 0.0
    %120 = vmatprep.subr.mxu0 0.0
    %121 = vmatpush1.msra.mxu0 0.0
    %122 = vmatprep.subr.mxu0 0.0
    %123 = vmatpush1.msra.mxu0 0.0
    %124 = vmatprep.subr.mxu0 0.0
    %125 = vmatpush1.msra.mxu0 0.0
    %126 = vmatprep.subr.mxu0 0.0
    %127 = vmatpush1.msra.mxu0 %v76
    %128 = vmatprep.subr.mxu0 0.0
    %129 = vmatpush1.msra.mxu0 %v75
    %130 = vmatprep.subr.mxu0 0.0
    %131 = vmatpush1.msra.mxu0 %v74
    %132 = vmatprep.subr.mxu0 0.0
    %133 = vmatpush1.msra.mxu0 %v73
    %134 = vmatprep.subr.mxu0 0.0
    %135 = vmatpush2.msra.mxu0 0.0
    %136 = vmatprep.subr.mxu0 0.0
    %137 = vmatpush2.msra.mxu0 0.0
    %138 = vmatprep.subr.mxu0 0.0
    %139 = vmatpush2.msra.mxu0 0.0
    %140 = vmatprep.subr.mxu0 0.0
    %141 = vmatpush2.msra.mxu0 0.0
    %142 = vmatprep.subr.mxu0 0.0
    %143 = vmatpush2.msra.mxu0 0.0
    %144 = vmatprep.subr.mxu0 0.0
    %145 = vmatpush2.msra.mxu0 0.0
    %146 = vmatprep.subr.mxu0 0.0
    %147 = vmatpush2.msra.mxu0 0.0
    %148 = vmatprep.subr.mxu0 0.0
    %149 = vmatpush2.msra.mxu0 0.0
    %150 = vmatprep.subr.mxu0 0.0
    %151 = vmatpush2.msra.mxu0 0.0
    %152 = vmatprep.subr.mxu0 0.0
    %153 = vmatpush2.msra.mxu0 0.0
    %154 = vmatprep.subr.mxu0 0.0
    %155 = vmatpush2.msra.mxu0 0.0
    %156 = vmatprep.subr.mxu0 0.0
    %157 = vmatpush2.msra.mxu0 0.0
    %158 = vmatprep.subr.mxu0 0.0
    %159 = vmatpush2.msra.mxu0 0.0
    %160 = vmatprep.subr.mxu0 0.0
    %161 = vmatpush2.msra.mxu0 0.0
    %162 = vmatprep.subr.mxu0 0.0
    %163 = vmatpush2.msra.mxu0 0.0
    %164 = vmatprep.subr.mxu0 0.0
    %165 = vmatpush2.msra.mxu0 0.0
    %166 = vmatprep.mubr.f32.mxu0 0.0
    %167 = vmatmul.mubr.f32.gmra.mxu0 %v79
    %v168 = vpop.f32.mrf.mxu0
    %v169 = vadd.f32 0.0, %v168
    %v170 = vpop.f32.mrf.mxu0
    %171 = vmatprep.mubr.f32.mxu0 0.0
    %172 = vmatmul.mubr.f32.gmra.mxu0 %v82
    %v173 = vpop.f32.mrf.mxu0
    %v174 = vadd.f32 0.0, %v173
    %v175 = vpop.f32.mrf.mxu0
    %176 = vmatprep.mubr.f32.mxu0 0.0
    %177 = vmatmul.mubr.f32.gmra.mxu0 %v85
    %v178 = vpop.f32.mrf.mxu0
    %v179 = vadd.f32 0.0, %v178
    %v180 = vpop.f32.mrf.mxu0
    %181 = vmatprep.mubr.f32.mxu0 0.0
    %182 = vmatmul.mubr.f32.gmra.mxu0 %v88
    %v183 = vpop.f32.mrf.mxu0
    %v184 = vadd.f32 0.0, %v183
    %v185 = vpop.f32.mrf.mxu0
    %186 = vmatprep.mubr.f32.mxu0 0.0
    %187 = vmatmul.mubr.f32.gmra.mxu0 %v91
    %v188 = vpop.f32.mrf.mxu0
    %v189 = vadd.f32 0.0, %v188
    %v190 = vpop.f32.mrf.mxu0
    %191 = vmatprep.mubr.f32.mxu0 0.0
    %192 = vmatmul.mubr.f32.gmra.mxu0 %v94
    %v193 = vpop.f32.mrf.mxu0
    %v194 = vadd.f32 0.0, %v193
    %v195 = vpop.f32.mrf.mxu0
    %196 = vmatprep.mubr.f32.mxu0 0.0
    %197 = vmatmul.mubr.f32.gmra.mxu0 %v97
    %v198 = vpop.f32.mrf.mxu0
    %v199 = vadd.f32 0.0, %v198
    %v200 = vpop.f32.mrf.mxu0
    %201 = vmatprep.mubr.f32.mxu0 0.0
    %202 = vmatmul.mubr.f32.gmra.mxu0 %v100
    %v203 = vpop.f32.mrf.mxu0
    %v204 = vadd.f32 0.0, %v203
    %v205 = vpop.f32.mrf.mxu0
    %206 = vdwg.mxu0
    %207 = vst.msk [vmem:[#allocation2] sm:$0xff] %vm77, %v169
    %208 = vst.msk [vmem:[#allocation2 + $0x8] sm:$0xff] %vm77, %v174
    %209 = vst.msk [vmem:[#allocation2 + $0x10] sm:$0xff] %vm77, %v179
    %210 = vst.msk [vmem:[#allocation2 + $0x18] sm:$0xff] %vm77, %v184
    %211 = vst.msk [vmem:[#allocation2 + $0x20] sm:$0xff] %vm77, %v189
    %212 = vst.msk [vmem:[#allocation2 + $0x28] sm:$0xff] %vm77, %v194
    %213 = vst.msk [vmem:[#allocation2 + $0x30] sm:$0xff] %vm77, %v199
    %214 = vst.msk [vmem:[#allocation2 + $0x38] sm:$0xff] %vm77, %v204
    %223 = vrot.lane.b32.xlu0 %v169, 96
    %v224 = vpop.permute.xlu0 %223
    %225 = vrot.lane.b32.xlu0 %v174, 96
    %v226 = vpop.permute.xlu0 %225
    %227 = vrot.lane.b32.xlu0 %v179, 96
    %v228 = vpop.permute.xlu0 %227
    %229 = vrot.lane.b32.xlu0 %v184, 96
    %v230 = vpop.permute.xlu0 %229
    %231 = vrot.lane.b32.xlu0 %v189, 96
    %v232 = vpop.permute.xlu0 %231
    %233 = vrot.lane.b32.xlu0 %v194, 96
    %v234 = vpop.permute.xlu0 %233
    %235 = vrot.lane.b32.xlu0 %v199, 96
    %v236 = vpop.permute.xlu0 %235
    %237 = vrot.lane.b32.xlu0 %v204, 96
    %v238 = vpop.permute.xlu0 %237
    %247 = vst.msk [vmem:[#allocation3] sm:$0xff] %vm77, %v224
    %248 = vst.msk [vmem:[#allocation3 + $0x8] sm:$0xff] %vm77, %v226
    %249 = vst.msk [vmem:[#allocation3 + $0x10] sm:$0xff] %vm77, %v228
    %250 = vst.msk [vmem:[#allocation3 + $0x18] sm:$0xff] %vm77, %v230
    %251 = vst.msk [vmem:[#allocation3 + $0x20] sm:$0xff] %vm77, %v232
    %252 = vst.msk [vmem:[#allocation3 + $0x28] sm:$0xff] %vm77, %v234
    %253 = vst.msk [vmem:[#allocation3 + $0x30] sm:$0xff] %vm77, %v236
    %254 = vst.msk [vmem:[#allocation3 + $0x38] sm:$0xff] %vm77, %v238
    %255 = vrot.lane.b32.xlu0 %v169, 64
    %v256 = vpop.permute.xlu0 %255
    %257 = vrot.lane.b32.xlu0 %v174, 64
    %v258 = vpop.permute.xlu0 %257
    %259 = vrot.lane.b32.xlu0 %v179, 64
    %v260 = vpop.permute.xlu0 %259
    %261 = vrot.lane.b32.xlu0 %v184, 64
    %v262 = vpop.permute.xlu0 %261
    %263 = vrot.lane.b32.xlu0 %v189, 64
    %v264 = vpop.permute.xlu0 %263
    %265 = vrot.lane.b32.xlu0 %v194, 64
    %v266 = vpop.permute.xlu0 %265
    %267 = vrot.lane.b32.xlu0 %v199, 64
    %v268 = vpop.permute.xlu0 %267
    %269 = vrot.lane.b32.xlu0 %v204, 64
    %v270 = vpop.permute.xlu0 %269
    %279 = vst.msk [vmem:[#allocation4] sm:$0xff] %vm77, %v256
    %280 = vst.msk [vmem:[#allocation4 + $0x8] sm:$0xff] %vm77, %v258
    %281 = vst.msk [vmem:[#allocation4 + $0x10] sm:$0xff] %vm77, %v260
    %282 = vst.msk [vmem:[#allocation4 + $0x18] sm:$0xff] %vm77, %v262
    %283 = vst.msk [vmem:[#allocation4 + $0x20] sm:$0xff] %vm77, %v264
    %284 = vst.msk [vmem:[#allocation4 + $0x28] sm:$0xff] %vm77, %v266
    %285 = vst.msk [vmem:[#allocation4 + $0x30] sm:$0xff] %vm77, %v268
    %286 = vst.msk [vmem:[#allocation4 + $0x38] sm:$0xff] %vm77, %v270
    %v287 = vld [vmem:[%s4] sm:$0xff]
    %v288 = vld [vmem:[%s4 + $0x8] sm:$0xff]
    %v289 = vld [vmem:[%s4 + $0x10] sm:$0xff]
    %v290 = vld [vmem:[%s4 + $0x18] sm:$0xff]
    %v291 = vld [vmem:[%s5] sm:$0x1]
    %v293 = vlaneseq
    %v294 = vshrl.u32 %v293, 7
    %v295 = vsub.s32 0, %v294
    %v296 = vrot.slane %v291, %v295
    %v299 = vsel %vm77, %v64, 0
    %301 = vmatprep.subr.mxu0 0.0
    %302 = vmatpush1.msra.mxu0 0.0
    %303 = vmatprep.subr.mxu0 0.0
    %304 = vmatpush1.msra.mxu0 0.0
    %305 = vmatprep.subr.mxu0 0.0
    %306 = vmatpush1.msra.mxu0 0.0
    %307 = vmatprep.subr.mxu0 0.0
    %308 = vmatpush1.msra.mxu0 0.0
    %309 = vmatprep.subr.mxu0 0.0
    %310 = vmatpush1.msra.mxu0 0.0
    %311 = vmatprep.subr.mxu0 0.0
    %312 = vmatpush1.msra.mxu0 0.0
    %313 = vmatprep.subr.mxu0 0.0
    %314 = vmatpush1.msra.mxu0 0.0
    %315 = vmatprep.subr.mxu0 0.0
    %316 = vmatpush1.msra.mxu0 0.0
    %317 = vmatprep.subr.mxu0 0.0
    %318 = vmatpush1.msra.mxu0 0.0
    %319 = vmatprep.subr.mxu0 0.0
    %320 = vmatpush1.msra.mxu0 0.0
    %321 = vmatprep.subr.mxu0 0.0
    %322 = vmatpush1.msra.mxu0 0.0
    %323 = vmatprep.subr.mxu0 0.0
    %324 = vmatpush1.msra.mxu0 0.0
    %325 = vmatprep.subr.mxu0 0.0
    %326 = vmatpush1.msra.mxu0 %v290
    %327 = vmatprep.subr.mxu0 0.0
    %328 = vmatpush1.msra.mxu0 %v289
    %329 = vmatprep.subr.mxu0 0.0
    %330 = vmatpush1.msra.mxu0 %v288
    %331 = vmatprep.subr.mxu0 0.0
    %332 = vmatpush1.msra.mxu0 %v287
    %333 = vmatprep.subr.mxu0 0.0
    %334 = vmatpush2.msra.mxu0 0.0
    %335 = vmatprep.subr.mxu0 0.0
    %336 = vmatpush2.msra.mxu0 0.0
    %337 = vmatprep.subr.mxu0 0.0
    %338 = vmatpush2.msra.mxu0 0.0
    %339 = vmatprep.subr.mxu0 0.0
    %340 = vmatpush2.msra.mxu0 0.0
    %341 = vmatprep.subr.mxu0 0.0
    %342 = vmatpush2.msra.mxu0 0.0
    %343 = vmatprep.subr.mxu0 0.0
    %344 = vmatpush2.msra.mxu0 0.0
    %345 = vmatprep.subr.mxu0 0.0
    %346 = vmatpush2.msra.mxu0 0.0
    %347 = vmatprep.subr.mxu0 0.0
    %348 = vmatpush2.msra.mxu0 0.0
    %349 = vmatprep.subr.mxu0 0.0
    %350 = vmatpush2.msra.mxu0 0.0
    %351 = vmatprep.subr.mxu0 0.0
    %352 = vmatpush2.msra.mxu0 0.0
    %353 = vmatprep.subr.mxu0 0.0
    %354 = vmatpush2.msra.mxu0 0.0
    %355 = vmatprep.subr.mxu0 0.0
    %356 = vmatpush2.msra.mxu0 0.0
    %357 = vmatprep.subr.mxu0 0.0
    %358 = vmatpush2.msra.mxu0 0.0
    %359 = vmatprep.subr.mxu0 0.0
    %360 = vmatpush2.msra.mxu0 0.0
    %361 = vmatprep.subr.mxu0 0.0
    %362 = vmatpush2.msra.mxu0 0.0
    %363 = vmatprep.subr.mxu0 0.0
    %364 = vmatpush2.msra.mxu0 0.0
    %365 = vmatprep.mubr.f32.mxu0 0.0
    %366 = vmatmul.mubr.f32.gmra.mxu0 %v299
    %v367 = vpop.f32.mrf.mxu0
    %v368 = vadd.f32 %v296, %v367
    %v369 = vpop.f32.mrf.mxu0
    %370 = vdwg.mxu0
    %v371 = vld [vmem:[%s6] sm:$0xff]
    %v372 = vld [vmem:[%s6 + $0x8] sm:$0xff]
    %v373 = vld [vmem:[%s6 + $0x10] sm:$0xff]
    %v374 = vld [vmem:[%s6 + $0x18] sm:$0xff]
    %v375 = vld [vmem:[%s7] sm:$0x1]
    %v377 = vsel %vm77, 0.0, 0
    %379 = vmatprep.subr.mxu0 0.0
    %380 = vmatpush1.msra.mxu0 0.0
    %381 = vmatprep.subr.mxu0 0.0
    %382 = vmatpush1.msra.mxu0 0.0
    %383 = vmatprep.subr.mxu0 0.0
    %384 = vmatpush1.msra.mxu0 0.0
    %385 = vmatprep.subr.mxu0 0.0
    %386 = vmatpush1.msra.mxu0 0.0
    %387 = vmatprep.subr.mxu0 0.0
    %388 = vmatpush1.msra.mxu0 0.0
    %389 = vmatprep.subr.mxu0 0.0
    %390 = vmatpush1.msra.mxu0 0.0
    %391 = vmatprep.subr.mxu0 0.0
    %392 = vmatpush1.msra.mxu0 0.0
    %393 = vmatprep.subr.mxu0 0.0
    %394 = vmatpush1.msra.mxu0 0.0
    %395 = vmatprep.subr.mxu0 0.0
    %396 = vmatpush1.msra.mxu0 0.0
    %397 = vmatprep.subr.mxu0 0.0
    %398 = vmatpush1.msra.mxu0 0.0
    %399 = vmatprep.subr.mxu0 0.0
    %400 = vmatpush1.msra.mxu0 0.0
    %401 = vmatprep.subr.mxu0 0.0
    %402 = vmatpush1.msra.mxu0 0.0
    %403 = vmatprep.subr.mxu0 0.0
    %404 = vmatpush1.msra.mxu0 %v374
    %405 = vmatprep.subr.mxu0 0.0
    %406 = vmatpush1.msra.mxu0 %v373
    %407 = vmatprep.subr.mxu0 0.0
    %408 = vmatpush1.msra.mxu0 %v372
    %409 = vmatprep.subr.mxu0 0.0
    %410 = vmatpush1.msra.mxu0 %v371
    %411 = vmatprep.subr.mxu0 0.0
    %412 = vmatpush2.msra.mxu0 0.0
    %413 = vmatprep.subr.mxu0 0.0
    %414 = vmatpush2.msra.mxu0 0.0
    %415 = vmatprep.subr.mxu0 0.0
    %416 = vmatpush2.msra.mxu0 0.0
    %417 = vmatprep.subr.mxu0 0.0
    %418 = vmatpush2.msra.mxu0 0.0
    %419 = vmatprep.subr.mxu0 0.0
    %420 = vmatpush2.msra.mxu0 0.0
    %421 = vmatprep.subr.mxu0 0.0
    %422 = vmatpush2.msra.mxu0 0.0
    %423 = vmatprep.subr.mxu0 0.0
    %424 = vmatpush2.msra.mxu0 0.0
    %425 = vmatprep.subr.mxu0 0.0
    %426 = vmatpush2.msra.mxu0 0.0
    %427 = vmatprep.subr.mxu0 0.0
    %428 = vmatpush2.msra.mxu0 0.0
    %429 = vmatprep.subr.mxu0 0.0
    %430 = vmatpush2.msra.mxu0 0.0
    %431 = vmatprep.subr.mxu0 0.0
    %432 = vmatpush2.msra.mxu0 0.0
    %433 = vmatprep.subr.mxu0 0.0
    %434 = vmatpush2.msra.mxu0 0.0
    %435 = vmatprep.subr.mxu0 0.0
    %436 = vmatpush2.msra.mxu0 0.0
    %437 = vmatprep.subr.mxu0 0.0
    %438 = vmatpush2.msra.mxu0 0.0
    %439 = vmatprep.subr.mxu0 0.0
    %440 = vmatpush2.msra.mxu0 0.0
    %441 = vmatprep.subr.mxu0 0.0
    %442 = vmatpush2.msra.mxu0 0.0
    %443 = vmatprep.mubr.f32.mxu0 0.0
    %444 = vmatmul.mubr.f32.gmra.mxu0 %v377
    %v445 = vpop.f32.mrf.mxu0
    %v446 = vadd.f32 0.0, %v445
    %v447 = vpop.f32.mrf.mxu0
    %448 = vdwg.mxu0
    %v449 = vld [vmem:[#allocation2] sm:$0xff]
    %v450 = vadd.f32 %v449, %v368
    %v451 = vadd.f32 %v450, %v446
    %v452 = vxor.u32 %v451, 2147483648
    %v453 = vmul.f32 %v452, 1.442695
    %v454 = vpow.pop %v453
    %v455 = vadd.f32 %v454, 1.0
    %v456 = vrcp.pop %v455
    %v457 = vmul.f32 1.0, %v456
    %v458 = vld [vmem:[#allocation3] sm:$0xff]
    %460 = vrot.lane.b32.xlu0 %v368, 96
    %v461 = vpop.permute.xlu0 %460
    %v463 = vadd.f32 %v458, %v461
    %465 = vrot.lane.b32.xlu0 %v446, 96
    %v466 = vpop.permute.xlu0 %465
    %v468 = vadd.f32 %v463, %v466
    %v469 = vxor.u32 %v468, 2147483648
    %v470 = vmul.f32 %v469, 1.442695
    %v471 = vpow.pop %v470
    %v472 = vadd.f32 %v471, 1.0
    %v473 = vrcp.pop %v472
    %v474 = vmul.f32 1.0, %v473
    %v475 = vld [vmem:[#allocation4] sm:$0xff]
    %476 = vrot.lane.b32.xlu0 %v368, 64
    %v477 = vpop.permute.xlu0 %476
    %v479 = vadd.f32 %v475, %v477
    %v481 = vlaneseq
    %v482 = vshrl.u32 %v481, 7
    %v483 = vsub.s32 0, %v482
    %v484 = vrot.slane %v375, %v483
    %485 = vrot.lane.b32.xlu0 %v484, 64
    %v486 = vpop.permute.xlu0 %485
    %v488 = vadd.f32 %v446, %v486
    %490 = vrot.lane.b32.xlu0 %v488, 64
    %v491 = vpop.permute.xlu0 %490
    %v493 = vmul.f32 %v457, %v491
    %v494 = vadd.f32 %v479, %v493
    %v495 = vtanh.pop %v494
    %v496 = vsub.f32 1.0, %v474
    %v497 = vmul.f32 %v496, %v495
    %v498 = vmul.f32 %v474, 0.0
    %v499 = vadd.f32 %v497, %v498
    %500 = vst.msk [vmem:[#allocation5] sm:$0xff] %vm77, %v499
    %v502 = vsel %vm77, %v499, 0
    %504 = vmatprep.subr.mxu0 0.0
    %505 = vmatpush1.msra.mxu0 0.0
    %506 = vmatprep.subr.mxu0 0.0
    %507 = vmatpush1.msra.mxu0 0.0
    %508 = vmatprep.subr.mxu0 0.0
    %509 = vmatpush1.msra.mxu0 0.0
    %510 = vmatprep.subr.mxu0 0.0
    %511 = vmatpush1.msra.mxu0 0.0
    %512 = vmatprep.subr.mxu0 0.0
    %513 = vmatpush1.msra.mxu0 0.0
    %514 = vmatprep.subr.mxu0 0.0
    %515 = vmatpush1.msra.mxu0 0.0
    %516 = vmatprep.subr.mxu0 0.0
    %517 = vmatpush1.msra.mxu0 0.0
    %518 = vmatprep.subr.mxu0 0.0
    %519 = vmatpush1.msra.mxu0 0.0
    %520 = vmatprep.subr.mxu0 0.0
    %521 = vmatpush1.msra.mxu0 0.0
    %522 = vmatprep.subr.mxu0 0.0
    %523 = vmatpush1.msra.mxu0 0.0
    %524 = vmatprep.subr.mxu0 0.0
    %525 = vmatpush1.msra.mxu0 0.0
    %526 = vmatprep.subr.mxu0 0.0
    %527 = vmatpush1.msra.mxu0 0.0
    %528 = vmatprep.subr.mxu0 0.0
    %529 = vmatpush1.msra.mxu0 %v374
    %530 = vmatprep.subr.mxu0 0.0
    %531 = vmatpush1.msra.mxu0 %v373
    %532 = vmatprep.subr.mxu0 0.0
    %533 = vmatpush1.msra.mxu0 %v372
    %534 = vmatprep.subr.mxu0 0.0
    %535 = vmatpush1.msra.mxu0 %v371
    %536 = vmatprep.subr.mxu0 0.0
    %537 = vmatpush2.msra.mxu0 0.0
    %538 = vmatprep.subr.mxu0 0.0
    %539 = vmatpush2.msra.mxu0 0.0
    %540 = vmatprep.subr.mxu0 0.0
    %541 = vmatpush2.msra.mxu0 0.0
    %542 = vmatprep.subr.mxu0 0.0
    %543 = vmatpush2.msra.mxu0 0.0
    %544 = vmatprep.subr.mxu0 0.0
    %545 = vmatpush2.msra.mxu0 0.0
    %546 = vmatprep.subr.mxu0 0.0
    %547 = vmatpush2.msra.mxu0 0.0
    %548 = vmatprep.subr.mxu0 0.0
    %549 = vmatpush2.msra.mxu0 0.0
    %550 = vmatprep.subr.mxu0 0.0
    %551 = vmatpush2.msra.mxu0 0.0
    %552 = vmatprep.subr.mxu0 0.0
    %553 = vmatpush2.msra.mxu0 0.0
    %554 = vmatprep.subr.mxu0 0.0
    %555 = vmatpush2.msra.mxu0 0.0
    %556 = vmatprep.subr.mxu0 0.0
    %557 = vmatpush2.msra.mxu0 0.0
    %558 = vmatprep.subr.mxu0 0.0
    %559 = vmatpush2.msra.mxu0 0.0
    %560 = vmatprep.subr.mxu0 0.0
    %561 = vmatpush2.msra.mxu0 0.0
    %562 = vmatprep.subr.mxu0 0.0
    %563 = vmatpush2.msra.mxu0 0.0
    %564 = vmatprep.subr.mxu0 0.0
    %565 = vmatpush2.msra.mxu0 0.0
    %566 = vmatprep.subr.mxu0 0.0
    %567 = vmatpush2.msra.mxu0 0.0
    %568 = vmatprep.mubr.f32.mxu0 0.0
    %569 = vmatmul.mubr.f32.gmra.mxu0 %v502
    %v570 = vpop.f32.mrf.mxu0
    %v571 = vadd.f32 0.0, %v570
    %v572 = vpop.f32.mrf.mxu0
    %573 = vdwg.mxu0
    %s574 = scalar_lea.vmem [#allocation2], 8
    %v575 = vld [vmem:[%s574] sm:$0xff]
    %v576 = vadd.f32 %v575, %v368
    %v577 = vadd.f32 %v576, %v571
    %v578 = vxor.u32 %v577, 2147483648
    %v579 = vmul.f32 %v578, 1.442695
    %v580 = vpow.pop %v579
    %v581 = vadd.f32 %v580, 1.0
    %v582 = vrcp.pop %v581
    %v583 = vmul.f32 1.0, %v582
    %s584 = scalar_lea.vmem [#allocation3], 8
    %v585 = vld [vmem:[%s584] sm:$0xff]
    %v586 = vadd.f32 %v585, %v461
    %588 = vrot.lane.b32.xlu0 %v571, 96
    %v589 = vpop.permute.xlu0 %588
    %v591 = vadd.f32 %v586, %v589
    %v592 = vxor.u32 %v591, 2147483648
    %v593 = vmul.f32 %v592, 1.442695
    %v594 = vpow.pop %v593
    %v595 = vadd.f32 %v594, 1.0
    %v596 = vrcp.pop %v595
    %v597 = vmul.f32 1.0, %v596
    %s598 = scalar_lea.vmem [#allocation4], 8
    %v599 = vld [vmem:[%s598] sm:$0xff]
    %v600 = vadd.f32 %v599, %v477
    %v601 = vadd.f32 %v571, %v486
    %603 = vrot.lane.b32.xlu0 %v601, 64
    %v604 = vpop.permute.xlu0 %603
    %v606 = vmul.f32 %v583, %v604
    %v607 = vadd.f32 %v600, %v606
    %v608 = vtanh.pop %v607
    %v609 = vsub.f32 1.0, %v597
    %v610 = vmul.f32 %v609, %v608
    %v611 = vmul.f32 %v597, %v499
    %v612 = vadd.f32 %v610, %v611
    %s613 = scalar_lea.vmem [#allocation5], 8
    %614 = vst.msk [vmem:[%s613] sm:$0xff] %vm77, %v612
    %v616 = vsel %vm77, %v612, 0
    %618 = vmatprep.subr.mxu0 0.0
    %619 = vmatpush1.msra.mxu0 0.0
    %620 = vmatprep.subr.mxu0 0.0
    %621 = vmatpush1.msra.mxu0 0.0
    %622 = vmatprep.subr.mxu0 0.0
    %623 = vmatpush1.msra.mxu0 0.0
    %624 = vmatprep.subr.mxu0 0.0
    %625 = vmatpush1.msra.mxu0 0.0
    %626 = vmatprep.subr.mxu0 0.0
    %627 = vmatpush1.msra.mxu0 0.0
    %628 = vmatprep.subr.mxu0 0.0
    %629 = vmatpush1.msra.mxu0 0.0
    %630 = vmatprep.subr.mxu0 0.0
    %631 = vmatpush1.msra.mxu0 0.0
    %632 = vmatprep.subr.mxu0 0.0
    %633 = vmatpush1.msra.mxu0 0.0
    %634 = vmatprep.subr.mxu0 0.0
    %635 = vmatpush1.msra.mxu0 0.0
    %636 = vmatprep.subr.mxu0 0.0
    %637 = vmatpush1.msra.mxu0 0.0
    %638 = vmatprep.subr.mxu0 0.0
    %639 = vmatpush1.msra.mxu0 0.0
    %640 = vmatprep.subr.mxu0 0.0
    %641 = vmatpush1.msra.mxu0 0.0
    %642 = vmatprep.subr.mxu0 0.0
    %643 = vmatpush1.msra.mxu0 %v374
    %644 = vmatprep.subr.mxu0 0.0
    %645 = vmatpush1.msra.mxu0 %v373
    %646 = vmatprep.subr.mxu0 0.0
    %647 = vmatpush1.msra.mxu0 %v372
    %648 = vmatprep.subr.mxu0 0.0
    %649 = vmatpush1.msra.mxu0 %v371
    %650 = vmatprep.subr.mxu0 0.0
    %651 = vmatpush2.msra.mxu0 0.0
    %652 = vmatprep.subr.mxu0 0.0
    %653 = vmatpush2.msra.mxu0 0.0
    %654 = vmatprep.subr.mxu0 0.0
    %655 = vmatpush2.msra.mxu0 0.0
    %656 = vmatprep.subr.mxu0 0.0
    %657 = vmatpush2.msra.mxu0 0.0
    %658 = vmatprep.subr.mxu0 0.0
    %659 = vmatpush2.msra.mxu0 0.0
    %660 = vmatprep.subr.mxu0 0.0
    %661 = vmatpush2.msra.mxu0 0.0
    %662 = vmatprep.subr.mxu0 0.0
    %663 = vmatpush2.msra.mxu0 0.0
    %664 = vmatprep.subr.mxu0 0.0
    %665 = vmatpush2.msra.mxu0 0.0
    %666 = vmatprep.subr.mxu0 0.0
    %667 = vmatpush2.msra.mxu0 0.0
    %668 = vmatprep.subr.mxu0 0.0
    %669 = vmatpush2.msra.mxu0 0.0
    %670 = vmatprep.subr.mxu0 0.0
    %671 = vmatpush2.msra.mxu0 0.0
    %672 = vmatprep.subr.mxu0 0.0
    %673 = vmatpush2.msra.mxu0 0.0
    %674 = vmatprep.subr.mxu0 0.0
    %675 = vmatpush2.msra.mxu0 0.0
    %676 = vmatprep.subr.mxu0 0.0
    %677 = vmatpush2.msra.mxu0 0.0
    %678 = vmatprep.subr.mxu0 0.0
    %679 = vmatpush2.msra.mxu0 0.0
    %680 = vmatprep.subr.mxu0 0.0
    %681 = vmatpush2.msra.mxu0 0.0
    %682 = vmatprep.mubr.f32.mxu0 0.0
    %683 = vmatmul.mubr.f32.gmra.mxu0 %v616
    %v684 = vpop.f32.mrf.mxu0
    %v685 = vadd.f32 0.0, %v684
    %v686 = vpop.f32.mrf.mxu0
    %687 = vdwg.mxu0
    %s688 = scalar_lea.vmem [#allocation2], 16
    %v689 = vld [vmem:[%s688] sm:$0xff]
    %v690 = vadd.f32 %v689, %v368
    %v691 = vadd.f32 %v690, %v685
    %v692 = vxor.u32 %v691, 2147483648
    %v693 = vmul.f32 %v692, 1.442695
    %v694 = vpow.pop %v693
    %v695 = vadd.f32 %v694, 1.0
    %v696 = vrcp.pop %v695
    %v697 = vmul.f32 1.0, %v696
    %s698 = scalar_lea.vmem [#allocation3], 16
    %v699 = vld [vmem:[%s698] sm:$0xff]
    %v700 = vadd.f32 %v699, %v461
    %702 = vrot.lane.b32.xlu0 %v685, 96
    %v703 = vpop.permute.xlu0 %702
    %v705 = vadd.f32 %v700, %v703
    %v706 = vxor.u32 %v705, 2147483648
    %v707 = vmul.f32 %v706, 1.442695
    %v708 = vpow.pop %v707
    %v709 = vadd.f32 %v708, 1.0
    %v710 = vrcp.pop %v709
    %v711 = vmul.f32 1.0, %v710
    %s712 = scalar_lea.vmem [#allocation4], 16
    %v713 = vld [vmem:[%s712] sm:$0xff]
    %v714 = vadd.f32 %v713, %v477
    %v715 = vadd.f32 %v685, %v486
    %717 = vrot.lane.b32.xlu0 %v715, 64
    %v718 = vpop.permute.xlu0 %717
    %v720 = vmul.f32 %v697, %v718
    %v721 = vadd.f32 %v714, %v720
    %v722 = vtanh.pop %v721
    %v723 = vsub.f32 1.0, %v711
    %v724 = vmul.f32 %v723, %v722
    %v725 = vmul.f32 %v711, %v612
    %v726 = vadd.f32 %v724, %v725
    %s727 = scalar_lea.vmem [#allocation5], 16
    %728 = vst.msk [vmem:[%s727] sm:$0xff] %vm77, %v726
    %v730 = vsel %vm77, %v726, 0
    %732 = vmatprep.subr.mxu0 0.0
    %733 = vmatpush1.msra.mxu0 0.0
    %734 = vmatprep.subr.mxu0 0.0
    %735 = vmatpush1.msra.mxu0 0.0
    %736 = vmatprep.subr.mxu0 0.0
    %737 = vmatpush1.msra.mxu0 0.0
    %738 = vmatprep.subr.mxu0 0.0
    %739 = vmatpush1.msra.mxu0 0.0
    %740 = vmatprep.subr.mxu0 0.0
    %741 = vmatpush1.msra.mxu0 0.0
    %742 = vmatprep.subr.mxu0 0.0
    %743 = vmatpush1.msra.mxu0 0.0
    %744 = vmatprep.subr.mxu0 0.0
    %745 = vmatpush1.msra.mxu0 0.0
    %746 = vmatprep.subr.mxu0 0.0
    %747 = vmatpush1.msra.mxu0 0.0
    %748 = vmatprep.subr.mxu0 0.0
    %749 = vmatpush1.msra.mxu0 0.0
    %750 = vmatprep.subr.mxu0 0.0
    %751 = vmatpush1.msra.mxu0 0.0
    %752 = vmatprep.subr.mxu0 0.0
    %753 = vmatpush1.msra.mxu0 0.0
    %754 = vmatprep.subr.mxu0 0.0
    %755 = vmatpush1.msra.mxu0 0.0
    %756 = vmatprep.subr.mxu0 0.0
    %757 = vmatpush1.msra.mxu0 %v374
    %758 = vmatprep.subr.mxu0 0.0
    %759 = vmatpush1.msra.mxu0 %v373
    %760 = vmatprep.subr.mxu0 0.0
    %761 = vmatpush1.msra.mxu0 %v372
    %762 = vmatprep.subr.mxu0 0.0
    %763 = vmatpush1.msra.mxu0 %v371
    %764 = vmatprep.subr.mxu0 0.0
    %765 = vmatpush2.msra.mxu0 0.0
    %766 = vmatprep.subr.mxu0 0.0
    %767 = vmatpush2.msra.mxu0 0.0
    %768 = vmatprep.subr.mxu0 0.0
    %769 = vmatpush2.msra.mxu0 0.0
    %770 = vmatprep.subr.mxu0 0.0
    %771 = vmatpush2.msra.mxu0 0.0
    %772 = vmatprep.subr.mxu0 0.0
    %773 = vmatpush2.msra.mxu0 0.0
    %774 = vmatprep.subr.mxu0 0.0
    %775 = vmatpush2.msra.mxu0 0.0
    %776 = vmatprep.subr.mxu0 0.0
    %777 = vmatpush2.msra.mxu0 0.0
    %778 = vmatprep.subr.mxu0 0.0
    %779 = vmatpush2.msra.mxu0 0.0
    %780 = vmatprep.subr.mxu0 0.0
    %781 = vmatpush2.msra.mxu0 0.0
    %782 = vmatprep.subr.mxu0 0.0
    %783 = vmatpush2.msra.mxu0 0.0
    %784 = vmatprep.subr.mxu0 0.0
    %785 = vmatpush2.msra.mxu0 0.0
    %786 = vmatprep.subr.mxu0 0.0
    %787 = vmatpush2.msra.mxu0 0.0
    %788 = vmatprep.subr.mxu0 0.0
    %789 = vmatpush2.msra.mxu0 0.0
    %790 = vmatprep.subr.mxu0 0.0
    %791 = vmatpush2.msra.mxu0 0.0
    %792 = vmatprep.subr.mxu0 0.0
    %793 = vmatpush2.msra.mxu0 0.0
    %794 = vmatprep.subr.mxu0 0.0
    %795 = vmatpush2.msra.mxu0 0.0
    %796 = vmatprep.mubr.f32.mxu0 0.0
    %797 = vmatmul.mubr.f32.gmra.mxu0 %v730
    %v798 = vpop.f32.mrf.mxu0
    %v799 = vadd.f32 0.0, %v798
    %v800 = vpop.f32.mrf.mxu0
    %801 = vdwg.mxu0
    %s802 = scalar_lea.vmem [#allocation2], 24
    %v803 = vld [vmem:[%s802] sm:$0xff]
    %v804 = vadd.f32 %v803, %v368
    %v805 = vadd.f32 %v804, %v799
    %v806 = vxor.u32 %v805, 2147483648
    %v807 = vmul.f32 %v806, 1.442695
    %v808 = vpow.pop %v807
    %v809 = vadd.f32 %v808, 1.0
    %v810 = vrcp.pop %v809
    %v811 = vmul.f32 1.0, %v810
    %s812 = scalar_lea.vmem [#allocation3], 24
    %v813 = vld [vmem:[%s812] sm:$0xff]
    %v814 = vadd.f32 %v813, %v461
    %816 = vrot.lane.b32.xlu0 %v799, 96
    %v817 = vpop.permute.xlu0 %816
    %v819 = vadd.f32 %v814, %v817
    %v820 = vxor.u32 %v819, 2147483648
    %v821 = vmul.f32 %v820, 1.442695
    %v822 = vpow.pop %v821
    %v823 = vadd.f32 %v822, 1.0
    %v824 = vrcp.pop %v823
    %v825 = vmul.f32 1.0, %v824
    %s826 = scalar_lea.vmem [#allocation4], 24
    %v827 = vld [vmem:[%s826] sm:$0xff]
    %v828 = vadd.f32 %v827, %v477
    %v829 = vadd.f32 %v799, %v486
    %831 = vrot.lane.b32.xlu0 %v829, 64
    %v832 = vpop.permute.xlu0 %831
    %v834 = vmul.f32 %v811, %v832
    %v835 = vadd.f32 %v828, %v834
    %v836 = vtanh.pop %v835
    %v837 = vsub.f32 1.0, %v825
    %v838 = vmul.f32 %v837, %v836
    %v839 = vmul.f32 %v825, %v726
    %v840 = vadd.f32 %v838, %v839
    %s841 = scalar_lea.vmem [#allocation5], 24
    %842 = vst.msk [vmem:[%s841] sm:$0xff] %vm77, %v840
    %v844 = vsel %vm77, %v840, 0
    %846 = vmatprep.subr.mxu0 0.0
    %847 = vmatpush1.msra.mxu0 0.0
    %848 = vmatprep.subr.mxu0 0.0
    %849 = vmatpush1.msra.mxu0 0.0
    %850 = vmatprep.subr.mxu0 0.0
    %851 = vmatpush1.msra.mxu0 0.0
    %852 = vmatprep.subr.mxu0 0.0
    %853 = vmatpush1.msra.mxu0 0.0
    %854 = vmatprep.subr.mxu0 0.0
    %855 = vmatpush1.msra.mxu0 0.0
    %856 = vmatprep.subr.mxu0 0.0
    %857 = vmatpush1.msra.mxu0 0.0
    %858 = vmatprep.subr.mxu0 0.0
    %859 = vmatpush1.msra.mxu0 0.0
    %860 = vmatprep.subr.mxu0 0.0
    %861 = vmatpush1.msra.mxu0 0.0
    %862 = vmatprep.subr.mxu0 0.0
    %863 = vmatpush1.msra.mxu0 0.0
    %864 = vmatprep.subr.mxu0 0.0
    %865 = vmatpush1.msra.mxu0 0.0
    %866 = vmatprep.subr.mxu0 0.0
    %867 = vmatpush1.msra.mxu0 0.0
    %868 = vmatprep.subr.mxu0 0.0
    %869 = vmatpush1.msra.mxu0 0.0
    %870 = vmatprep.subr.mxu0 0.0
    %871 = vmatpush1.msra.mxu0 %v374
    %872 = vmatprep.subr.mxu0 0.0
    %873 = vmatpush1.msra.mxu0 %v373
    %874 = vmatprep.subr.mxu0 0.0
    %875 = vmatpush1.msra.mxu0 %v372
    %876 = vmatprep.subr.mxu0 0.0
    %877 = vmatpush1.msra.mxu0 %v371
    %878 = vmatprep.subr.mxu0 0.0
    %879 = vmatpush2.msra.mxu0 0.0
    %880 = vmatprep.subr.mxu0 0.0
    %881 = vmatpush2.msra.mxu0 0.0
    %882 = vmatprep.subr.mxu0 0.0
    %883 = vmatpush2.msra.mxu0 0.0
    %884 = vmatprep.subr.mxu0 0.0
    %885 = vmatpush2.msra.mxu0 0.0
    %886 = vmatprep.subr.mxu0 0.0
    %887 = vmatpush2.msra.mxu0 0.0
    %888 = vmatprep.subr.mxu0 0.0
    %889 = vmatpush2.msra.mxu0 0.0
    %890 = vmatprep.subr.mxu0 0.0
    %891 = vmatpush2.msra.mxu0 0.0
    %892 = vmatprep.subr.mxu0 0.0
    %893 = vmatpush2.msra.mxu0 0.0
    %894 = vmatprep.subr.mxu0 0.0
    %895 = vmatpush2.msra.mxu0 0.0
    %896 = vmatprep.subr.mxu0 0.0
    %897 = vmatpush2.msra.mxu0 0.0
    %898 = vmatprep.subr.mxu0 0.0
    %899 = vmatpush2.msra.mxu0 0.0
    %900 = vmatprep.subr.mxu0 0.0
    %901 = vmatpush2.msra.mxu0 0.0
    %902 = vmatprep.subr.mxu0 0.0
    %903 = vmatpush2.msra.mxu0 0.0
    %904 = vmatprep.subr.mxu0 0.0
    %905 = vmatpush2.msra.mxu0 0.0
    %906 = vmatprep.subr.mxu0 0.0
    %907 = vmatpush2.msra.mxu0 0.0
    %908 = vmatprep.subr.mxu0 0.0
    %909 = vmatpush2.msra.mxu0 0.0
    %910 = vmatprep.mubr.f32.mxu0 0.0
    %911 = vmatmul.mubr.f32.gmra.mxu0 %v844
    %v912 = vpop.f32.mrf.mxu0
    %v913 = vadd.f32 0.0, %v912
    %v914 = vpop.f32.mrf.mxu0
    %915 = vdwg.mxu0
    %s916 = scalar_lea.vmem [#allocation2], 32
    %v917 = vld [vmem:[%s916] sm:$0xff]
    %v918 = vadd.f32 %v917, %v368
    %v919 = vadd.f32 %v918, %v913
    %v920 = vxor.u32 %v919, 2147483648
    %v921 = vmul.f32 %v920, 1.442695
    %v922 = vpow.pop %v921
    %v923 = vadd.f32 %v922, 1.0
    %v924 = vrcp.pop %v923
    %v925 = vmul.f32 1.0, %v924
    %s926 = scalar_lea.vmem [#allocation3], 32
    %v927 = vld [vmem:[%s926] sm:$0xff]
    %v928 = vadd.f32 %v927, %v461
    %930 = vrot.lane.b32.xlu0 %v913, 96
    %v931 = vpop.permute.xlu0 %930
    %v933 = vadd.f32 %v928, %v931
    %v934 = vxor.u32 %v933, 2147483648
    %v935 = vmul.f32 %v934, 1.442695
    %v936 = vpow.pop %v935
    %v937 = vadd.f32 %v936, 1.0
    %v938 = vrcp.pop %v937
    %v939 = vmul.f32 1.0, %v938
    %s940 = scalar_lea.vmem [#allocation4], 32
    %v941 = vld [vmem:[%s940] sm:$0xff]
    %v942 = vadd.f32 %v941, %v477
    %v943 = vadd.f32 %v913, %v486
    %945 = vrot.lane.b32.xlu0 %v943, 64
    %v946 = vpop.permute.xlu0 %945
    %v948 = vmul.f32 %v925, %v946
    %v949 = vadd.f32 %v942, %v948
    %v950 = vtanh.pop %v949
    %v951 = vsub.f32 1.0, %v939
    %v952 = vmul.f32 %v951, %v950
    %v953 = vmul.f32 %v939, %v840
    %v954 = vadd.f32 %v952, %v953
    %s955 = scalar_lea.vmem [#allocation5], 32
    %956 = vst.msk [vmem:[%s955] sm:$0xff] %vm77, %v954
    %v958 = vsel %vm77, %v954, 0
    %960 = vmatprep.subr.mxu0 0.0
    %961 = vmatpush1.msra.mxu0 0.0
    %962 = vmatprep.subr.mxu0 0.0
    %963 = vmatpush1.msra.mxu0 0.0
    %964 = vmatprep.subr.mxu0 0.0
    %965 = vmatpush1.msra.mxu0 0.0
    %966 = vmatprep.subr.mxu0 0.0
    %967 = vmatpush1.msra.mxu0 0.0
    %968 = vmatprep.subr.mxu0 0.0
    %969 = vmatpush1.msra.mxu0 0.0
    %970 = vmatprep.subr.mxu0 0.0
    %971 = vmatpush1.msra.mxu0 0.0
    %972 = vmatprep.subr.mxu0 0.0
    %973 = vmatpush1.msra.mxu0 0.0
    %974 = vmatprep.subr.mxu0 0.0
    %975 = vmatpush1.msra.mxu0 0.0
    %976 = vmatprep.subr.mxu0 0.0
    %977 = vmatpush1.msra.mxu0 0.0
    %978 = vmatprep.subr.mxu0 0.0
    %979 = vmatpush1.msra.mxu0 0.0
    %980 = vmatprep.subr.mxu0 0.0
    %981 = vmatpush1.msra.mxu0 0.0
    %982 = vmatprep.subr.mxu0 0.0
    %983 = vmatpush1.msra.mxu0 0.0
    %984 = vmatprep.subr.mxu0 0.0
    %985 = vmatpush1.msra.mxu0 %v374
    %986 = vmatprep.subr.mxu0 0.0
    %987 = vmatpush1.msra.mxu0 %v373
    %988 = vmatprep.subr.mxu0 0.0
    %989 = vmatpush1.msra.mxu0 %v372
    %990 = vmatprep.subr.mxu0 0.0
    %991 = vmatpush1.msra.mxu0 %v371
    %992 = vmatprep.subr.mxu0 0.0
    %993 = vmatpush2.msra.mxu0 0.0
    %994 = vmatprep.subr.mxu0 0.0
    %995 = vmatpush2.msra.mxu0 0.0
    %996 = vmatprep.subr.mxu0 0.0
    %997 = vmatpush2.msra.mxu0 0.0
    %998 = vmatprep.subr.mxu0 0.0
    %999 = vmatpush2.msra.mxu0 0.0
    %1000 = vmatprep.subr.mxu0 0.0
    %1001 = vmatpush2.msra.mxu0 0.0
    %1002 = vmatprep.subr.mxu0 0.0
    %1003 = vmatpush2.msra.mxu0 0.0
    %1004 = vmatprep.subr.mxu0 0.0
    %1005 = vmatpush2.msra.mxu0 0.0
    %1006 = vmatprep.subr.mxu0 0.0
    %1007 = vmatpush2.msra.mxu0 0.0
    %1008 = vmatprep.subr.mxu0 0.0
    %1009 = vmatpush2.msra.mxu0 0.0
    %1010 = vmatprep.subr.mxu0 0.0
    %1011 = vmatpush2.msra.mxu0 0.0
    %1012 = vmatprep.subr.mxu0 0.0
    %1013 = vmatpush2.msra.mxu0 0.0
    %1014 = vmatprep.subr.mxu0 0.0
    %1015 = vmatpush2.msra.mxu0 0.0
    %1016 = vmatprep.subr.mxu0 0.0
    %1017 = vmatpush2.msra.mxu0 0.0
    %1018 = vmatprep.subr.mxu0 0.0
    %1019 = vmatpush2.msra.mxu0 0.0
    %1020 = vmatprep.subr.mxu0 0.0
    %1021 = vmatpush2.msra.mxu0 0.0
    %1022 = vmatprep.subr.mxu0 0.0
    %1023 = vmatpush2.msra.mxu0 0.0
    %1024 = vmatprep.mubr.f32.mxu0 0.0
    %1025 = vmatmul.mubr.f32.gmra.mxu0 %v958
    %v1026 = vpop.f32.mrf.mxu0
    %v1027 = vadd.f32 0.0, %v1026
    %v1028 = vpop.f32.mrf.mxu0
    %1029 = vdwg.mxu0
    %s1030 = scalar_lea.vmem [#allocation2], 40
    %v1031 = vld [vmem:[%s1030] sm:$0xff]
    %v1032 = vadd.f32 %v1031, %v368
    %v1033 = vadd.f32 %v1032, %v1027
    %v1034 = vxor.u32 %v1033, 2147483648
    %v1035 = vmul.f32 %v1034, 1.442695
    %v1036 = vpow.pop %v1035
    %v1037 = vadd.f32 %v1036, 1.0
    %v1038 = vrcp.pop %v1037
    %v1039 = vmul.f32 1.0, %v1038
    %s1040 = scalar_lea.vmem [#allocation3], 40
    %v1041 = vld [vmem:[%s1040] sm:$0xff]
    %v1042 = vadd.f32 %v1041, %v461
    %1044 = vrot.lane.b32.xlu0 %v1027, 96
    %v1045 = vpop.permute.xlu0 %1044
    %v1047 = vadd.f32 %v1042, %v1045
    %v1048 = vxor.u32 %v1047, 2147483648
    %v1049 = vmul.f32 %v1048, 1.442695
    %v1050 = vpow.pop %v1049
    %v1051 = vadd.f32 %v1050, 1.0
    %v1052 = vrcp.pop %v1051
    %v1053 = vmul.f32 1.0, %v1052
    %s1054 = scalar_lea.vmem [#allocation4], 40
    %v1055 = vld [vmem:[%s1054] sm:$0xff]
    %v1056 = vadd.f32 %v1055, %v477
    %v1057 = vadd.f32 %v1027, %v486
    %1059 = vrot.lane.b32.xlu0 %v1057, 64
    %v1060 = vpop.permute.xlu0 %1059
    %v1062 = vmul.f32 %v1039, %v1060
    %v1063 = vadd.f32 %v1056, %v1062
    %v1064 = vtanh.pop %v1063
    %v1065 = vsub.f32 1.0, %v1053
    %v1066 = vmul.f32 %v1065, %v1064
    %v1067 = vmul.f32 %v1053, %v954
    %v1068 = vadd.f32 %v1066, %v1067
    %s1069 = scalar_lea.vmem [#allocation5], 40
    %1070 = vst.msk [vmem:[%s1069] sm:$0xff] %vm77, %v1068
    %v1072 = vsel %vm77, %v1068, 0
    %1074 = vmatprep.subr.mxu0 0.0
    %1075 = vmatpush1.msra.mxu0 0.0
    %1076 = vmatprep.subr.mxu0 0.0
    %1077 = vmatpush1.msra.mxu0 0.0
    %1078 = vmatprep.subr.mxu0 0.0
    %1079 = vmatpush1.msra.mxu0 0.0
    %1080 = vmatprep.subr.mxu0 0.0
    %1081 = vmatpush1.msra.mxu0 0.0
    %1082 = vmatprep.subr.mxu0 0.0
    %1083 = vmatpush1.msra.mxu0 0.0
    %1084 = vmatprep.subr.mxu0 0.0
    %1085 = vmatpush1.msra.mxu0 0.0
    %1086 = vmatprep.subr.mxu0 0.0
    %1087 = vmatpush1.msra.mxu0 0.0
    %1088 = vmatprep.subr.mxu0 0.0
    %1089 = vmatpush1.msra.mxu0 0.0
    %1090 = vmatprep.subr.mxu0 0.0
    %1091 = vmatpush1.msra.mxu0 0.0
    %1092 = vmatprep.subr.mxu0 0.0
    %1093 = vmatpush1.msra.mxu0 0.0
    %1094 = vmatprep.subr.mxu0 0.0
    %1095 = vmatpush1.msra.mxu0 0.0
    %1096 = vmatprep.subr.mxu0 0.0
    %1097 = vmatpush1.msra.mxu0 0.0
    %1098 = vmatprep.subr.mxu0 0.0
    %1099 = vmatpush1.msra.mxu0 %v374
    %1100 = vmatprep.subr.mxu0 0.0
    %1101 = vmatpush1.msra.mxu0 %v373
    %1102 = vmatprep.subr.mxu0 0.0
    %1103 = vmatpush1.msra.mxu0 %v372
    %1104 = vmatprep.subr.mxu0 0.0
    %1105 = vmatpush1.msra.mxu0 %v371
    %1106 = vmatprep.subr.mxu0 0.0
    %1107 = vmatpush2.msra.mxu0 0.0
    %1108 = vmatprep.subr.mxu0 0.0
    %1109 = vmatpush2.msra.mxu0 0.0
    %1110 = vmatprep.subr.mxu0 0.0
    %1111 = vmatpush2.msra.mxu0 0.0
    %1112 = vmatprep.subr.mxu0 0.0
    %1113 = vmatpush2.msra.mxu0 0.0
    %1114 = vmatprep.subr.mxu0 0.0
    %1115 = vmatpush2.msra.mxu0 0.0
    %1116 = vmatprep.subr.mxu0 0.0
    %1117 = vmatpush2.msra.mxu0 0.0
    %1118 = vmatprep.subr.mxu0 0.0
    %1119 = vmatpush2.msra.mxu0 0.0
    %1120 = vmatprep.subr.mxu0 0.0
    %1121 = vmatpush2.msra.mxu0 0.0
    %1122 = vmatprep.subr.mxu0 0.0
    %1123 = vmatpush2.msra.mxu0 0.0
    %1124 = vmatprep.subr.mxu0 0.0
    %1125 = vmatpush2.msra.mxu0 0.0
    %1126 = vmatprep.subr.mxu0 0.0
    %1127 = vmatpush2.msra.mxu0 0.0
    %1128 = vmatprep.subr.mxu0 0.0
    %1129 = vmatpush2.msra.mxu0 0.0
    %1130 = vmatprep.subr.mxu0 0.0
    %1131 = vmatpush2.msra.mxu0 0.0
    %1132 = vmatprep.subr.mxu0 0.0
    %1133 = vmatpush2.msra.mxu0 0.0
    %1134 = vmatprep.subr.mxu0 0.0
    %1135 = vmatpush2.msra.mxu0 0.0
    %1136 = vmatprep.subr.mxu0 0.0
    %1137 = vmatpush2.msra.mxu0 0.0
    %1138 = vmatprep.mubr.f32.mxu0 0.0
    %1139 = vmatmul.mubr.f32.gmra.mxu0 %v1072
    %v1140 = vpop.f32.mrf.mxu0
    %v1141 = vadd.f32 0.0, %v1140
    %v1142 = vpop.f32.mrf.mxu0
    %1143 = vdwg.mxu0
    %s1144 = scalar_lea.vmem [#allocation2], 48
    %v1145 = vld [vmem:[%s1144] sm:$0xff]
    %v1146 = vadd.f32 %v1145, %v368
    %v1147 = vadd.f32 %v1146, %v1141
    %v1148 = vxor.u32 %v1147, 2147483648
    %v1149 = vmul.f32 %v1148, 1.442695
    %v1150 = vpow.pop %v1149
    %v1151 = vadd.f32 %v1150, 1.0
    %v1152 = vrcp.pop %v1151
    %v1153 = vmul.f32 1.0, %v1152
    %s1154 = scalar_lea.vmem [#allocation3], 48
    %v1155 = vld [vmem:[%s1154] sm:$0xff]
    %v1156 = vadd.f32 %v1155, %v461
    %1158 = vrot.lane.b32.xlu0 %v1141, 96
    %v1159 = vpop.permute.xlu0 %1158
    %v1161 = vadd.f32 %v1156, %v1159
    %v1162 = vxor.u32 %v1161, 2147483648
    %v1163 = vmul.f32 %v1162, 1.442695
    %v1164 = vpow.pop %v1163
    %v1165 = vadd.f32 %v1164, 1.0
    %v1166 = vrcp.pop %v1165
    %v1167 = vmul.f32 1.0, %v1166
    %s1168 = scalar_lea.vmem [#allocation4], 48
    %v1169 = vld [vmem:[%s1168] sm:$0xff]
    %v1170 = vadd.f32 %v1169, %v477
    %v1171 = vadd.f32 %v1141, %v486
    %1173 = vrot.lane.b32.xlu0 %v1171, 64
    %v1174 = vpop.permute.xlu0 %1173
    %v1176 = vmul.f32 %v1153, %v1174
    %v1177 = vadd.f32 %v1170, %v1176
    %v1178 = vtanh.pop %v1177
    %v1179 = vsub.f32 1.0, %v1167
    %v1180 = vmul.f32 %v1179, %v1178
    %v1181 = vmul.f32 %v1167, %v1068
    %v1182 = vadd.f32 %v1180, %v1181
    %s1183 = scalar_lea.vmem [#allocation5], 48
    %1184 = vst.msk [vmem:[%s1183] sm:$0xff] %vm77, %v1182
    %v1186 = vsel %vm77, %v1182, 0
    %1188 = vmatprep.subr.mxu0 0.0
    %1189 = vmatpush1.msra.mxu0 0.0
    %1190 = vmatprep.subr.mxu0 0.0
    %1191 = vmatpush1.msra.mxu0 0.0
    %1192 = vmatprep.subr.mxu0 0.0
    %1193 = vmatpush1.msra.mxu0 0.0
    %1194 = vmatprep.subr.mxu0 0.0
    %1195 = vmatpush1.msra.mxu0 0.0
    %1196 = vmatprep.subr.mxu0 0.0
    %1197 = vmatpush1.msra.mxu0 0.0
    %1198 = vmatprep.subr.mxu0 0.0
    %1199 = vmatpush1.msra.mxu0 0.0
    %1200 = vmatprep.subr.mxu0 0.0
    %1201 = vmatpush1.msra.mxu0 0.0
    %1202 = vmatprep.subr.mxu0 0.0
    %1203 = vmatpush1.msra.mxu0 0.0
    %1204 = vmatprep.subr.mxu0 0.0
    %1205 = vmatpush1.msra.mxu0 0.0
    %1206 = vmatprep.subr.mxu0 0.0
    %1207 = vmatpush1.msra.mxu0 0.0
    %1208 = vmatprep.subr.mxu0 0.0
    %1209 = vmatpush1.msra.mxu0 0.0
    %1210 = vmatprep.subr.mxu0 0.0
    %1211 = vmatpush1.msra.mxu0 0.0
    %1212 = vmatprep.subr.mxu0 0.0
    %1213 = vmatpush1.msra.mxu0 %v374
    %1214 = vmatprep.subr.mxu0 0.0
    %1215 = vmatpush1.msra.mxu0 %v373
    %1216 = vmatprep.subr.mxu0 0.0
    %1217 = vmatpush1.msra.mxu0 %v372
    %1218 = vmatprep.subr.mxu0 0.0
    %1219 = vmatpush1.msra.mxu0 %v371
    %1220 = vmatprep.subr.mxu0 0.0
    %1221 = vmatpush2.msra.mxu0 0.0
    %1222 = vmatprep.subr.mxu0 0.0
    %1223 = vmatpush2.msra.mxu0 0.0
    %1224 = vmatprep.subr.mxu0 0.0
    %1225 = vmatpush2.msra.mxu0 0.0
    %1226 = vmatprep.subr.mxu0 0.0
    %1227 = vmatpush2.msra.mxu0 0.0
    %1228 = vmatprep.subr.mxu0 0.0
    %1229 = vmatpush2.msra.mxu0 0.0
    %1230 = vmatprep.subr.mxu0 0.0
    %1231 = vmatpush2.msra.mxu0 0.0
    %1232 = vmatprep.subr.mxu0 0.0
    %1233 = vmatpush2.msra.mxu0 0.0
    %1234 = vmatprep.subr.mxu0 0.0
    %1235 = vmatpush2.msra.mxu0 0.0
    %1236 = vmatprep.subr.mxu0 0.0
    %1237 = vmatpush2.msra.mxu0 0.0
    %1238 = vmatprep.subr.mxu0 0.0
    %1239 = vmatpush2.msra.mxu0 0.0
    %1240 = vmatprep.subr.mxu0 0.0
    %1241 = vmatpush2.msra.mxu0 0.0
    %1242 = vmatprep.subr.mxu0 0.0
    %1243 = vmatpush2.msra.mxu0 0.0
    %1244 = vmatprep.subr.mxu0 0.0
    %1245 = vmatpush2.msra.mxu0 0.0
    %1246 = vmatprep.subr.mxu0 0.0
    %1247 = vmatpush2.msra.mxu0 0.0
    %1248 = vmatprep.subr.mxu0 0.0
    %1249 = vmatpush2.msra.mxu0 0.0
    %1250 = vmatprep.subr.mxu0 0.0
    %1251 = vmatpush2.msra.mxu0 0.0
    %1252 = vmatprep.mubr.f32.mxu0 0.0
    %1253 = vmatmul.mubr.f32.gmra.mxu0 %v1186
    %v1254 = vpop.f32.mrf.mxu0
    %v1255 = vadd.f32 0.0, %v1254
    %v1256 = vpop.f32.mrf.mxu0
    %1257 = vdwg.mxu0
    %s1258 = scalar_lea.vmem [#allocation2], 56
    %v1259 = vld [vmem:[%s1258] sm:$0xff]
    %v1260 = vadd.f32 %v1259, %v368
    %v1261 = vadd.f32 %v1260, %v1255
    %v1262 = vxor.u32 %v1261, 2147483648
    %v1263 = vmul.f32 %v1262, 1.442695
    %v1264 = vpow.pop %v1263
    %v1265 = vadd.f32 %v1264, 1.0
    %v1266 = vrcp.pop %v1265
    %v1267 = vmul.f32 1.0, %v1266
    %s1268 = scalar_lea.vmem [#allocation3], 56
    %v1269 = vld [vmem:[%s1268] sm:$0xff]
    %v1270 = vadd.f32 %v1269, %v461
    %1272 = vrot.lane.b32.xlu0 %v1255, 96
    %v1273 = vpop.permute.xlu0 %1272
    %v1275 = vadd.f32 %v1270, %v1273
    %v1276 = vxor.u32 %v1275, 2147483648
    %v1277 = vmul.f32 %v1276, 1.442695
    %v1278 = vpow.pop %v1277
    %v1279 = vadd.f32 %v1278, 1.0
    %v1280 = vrcp.pop %v1279
    %v1281 = vmul.f32 1.0, %v1280
    %s1282 = scalar_lea.vmem [#allocation4], 56
    %v1283 = vld [vmem:[%s1282] sm:$0xff]
    %v1284 = vadd.f32 %v1283, %v477
    %v1285 = vadd.f32 %v1255, %v486
    %1287 = vrot.lane.b32.xlu0 %v1285, 64
    %v1288 = vpop.permute.xlu0 %1287
    %v1290 = vmul.f32 %v1267, %v1288
    %v1291 = vadd.f32 %v1284, %v1290
    %v1292 = vtanh.pop %v1291
    %v1293 = vsub.f32 1.0, %v1281
    %v1294 = vmul.f32 %v1293, %v1292
    %v1295 = vmul.f32 %v1281, %v1182
    %v1296 = vadd.f32 %v1294, %v1295
    %s1297 = scalar_lea.vmem [#allocation5], 56
    %1298 = vst.msk [vmem:[%s1297] sm:$0xff] %vm77, %v1296
    %v1299 = vld [vmem:[#allocation5] sm:$0xff]
    %v1300 = vld [vmem:[#allocation5 + $0x8] sm:$0xff]
    %v1301 = vld [vmem:[#allocation5 + $0x10] sm:$0xff]
    %v1302 = vld [vmem:[#allocation5 + $0x18] sm:$0xff]
    %v1303 = vld [vmem:[#allocation5 + $0x20] sm:$0xff]
    %v1304 = vld [vmem:[#allocation5 + $0x28] sm:$0xff]
    %v1305 = vld [vmem:[#allocation5 + $0x30] sm:$0xff]
    %v1306 = vld [vmem:[#allocation5 + $0x38] sm:$0xff]
    %v1307 = vld [vmem:[%s9] sm:$0xff]
    %v1308 = vld [vmem:[%s9 + $0x8] sm:$0xff]
    %v1309 = vld [vmem:[%s9 + $0x10] sm:$0xff]
    %v1310 = vld [vmem:[%s9 + $0x18] sm:$0xff]
    %v1311 = vld [vmem:[%s10] sm:$0x1]
    %v1313 = vlaneseq
    %v1314 = vshrl.u32 %v1313, 7
    %v1315 = vsub.s32 0, %v1314
    %v1316 = vrot.slane %v1311, %v1315
    %1318 = vmatprep.subr.mxu0 0.0
    %1319 = vmatpush1.msra.mxu0 0.0
    %1320 = vmatprep.subr.mxu0 0.0
    %1321 = vmatpush1.msra.mxu0 0.0
    %1322 = vmatprep.subr.mxu0 0.0
    %1323 = vmatpush1.msra.mxu0 0.0
    %1324 = vmatprep.subr.mxu0 0.0
    %1325 = vmatpush1.msra.mxu0 0.0
    %1326 = vmatprep.subr.mxu0 0.0
    %1327 = vmatpush1.msra.mxu0 0.0
    %1328 = vmatprep.subr.mxu0 0.0
    %1329 = vmatpush1.msra.mxu0 0.0
    %1330 = vmatprep.subr.mxu0 0.0
    %1331 = vmatpush1.msra.mxu0 0.0
    %1332 = vmatprep.subr.mxu0 0.0
    %1333 = vmatpush1.msra.mxu0 0.0
    %1334 = vmatprep.subr.mxu0 0.0
    %1335 = vmatpush1.msra.mxu0 0.0
    %1336 = vmatprep.subr.mxu0 0.0
    %1337 = vmatpush1.msra.mxu0 0.0
    %1338 = vmatprep.subr.mxu0 0.0
    %1339 = vmatpush1.msra.mxu0 0.0
    %1340 = vmatprep.subr.mxu0 0.0
    %1341 = vmatpush1.msra.mxu0 0.0
    %1342 = vmatprep.subr.mxu0 0.0
    %1343 = vmatpush1.msra.mxu0 %v1310
    %1344 = vmatprep.subr.mxu0 0.0
    %1345 = vmatpush1.msra.mxu0 %v1309
    %1346 = vmatprep.subr.mxu0 0.0
    %1347 = vmatpush1.msra.mxu0 %v1308
    %1348 = vmatprep.subr.mxu0 0.0
    %1349 = vmatpush1.msra.mxu0 %v1307
    %1350 = vmatprep.subr.mxu0 0.0
    %1351 = vmatpush2.msra.mxu0 0.0
    %1352 = vmatprep.subr.mxu0 0.0
    %1353 = vmatpush2.msra.mxu0 0.0
    %1354 = vmatprep.subr.mxu0 0.0
    %1355 = vmatpush2.msra.mxu0 0.0
    %1356 = vmatprep.subr.mxu0 0.0
    %1357 = vmatpush2.msra.mxu0 0.0
    %1358 = vmatprep.subr.mxu0 0.0
    %1359 = vmatpush2.msra.mxu0 0.0
    %1360 = vmatprep.subr.mxu0 0.0
    %1361 = vmatpush2.msra.mxu0 0.0
    %1362 = vmatprep.subr.mxu0 0.0
    %1363 = vmatpush2.msra.mxu0 0.0
    %1364 = vmatprep.subr.mxu0 0.0
    %1365 = vmatpush2.msra.mxu0 0.0
    %1366 = vmatprep.subr.mxu0 0.0
    %1367 = vmatpush2.msra.mxu0 0.0
    %1368 = vmatprep.subr.mxu0 0.0
    %1369 = vmatpush2.msra.mxu0 0.0
    %1370 = vmatprep.subr.mxu0 0.0
    %1371 = vmatpush2.msra.mxu0 0.0
    %1372 = vmatprep.subr.mxu0 0.0
    %1373 = vmatpush2.msra.mxu0 0.0
    %1374 = vmatprep.subr.mxu0 0.0
    %1375 = vmatpush2.msra.mxu0 0.0
    %1376 = vmatprep.subr.mxu0 0.0
    %1377 = vmatpush2.msra.mxu0 0.0
    %1378 = vmatprep.subr.mxu0 0.0
    %1379 = vmatpush2.msra.mxu0 0.0
    %1380 = vmatprep.subr.mxu0 0.0
    %1381 = vmatpush2.msra.mxu0 0.0
    %1382 = vmatprep.mubr.f32.mxu0 0.0
    %1383 = vmatmul.mubr.f32.gmra.mxu0 %v299
    %v1384 = vpop.f32.mrf.mxu0
    %v1385 = vadd.f32 %v1316, %v1384
    %v1386 = vpop.f32.mrf.mxu0
    %1387 = vdwg.mxu0
    %v1388 = vld [vmem:[%s8] sm:$0xff]
    %v1389 = vld [vmem:[%s8 + $0x8] sm:$0xff]
    %v1390 = vld [vmem:[%s8 + $0x10] sm:$0xff]
    %v1391 = vld [vmem:[%s8 + $0x18] sm:$0xff]
    %v1393 = vsel %vm77, %v1299, 0
    %v1396 = vsel %vm77, %v1300, 0
    %v1399 = vsel %vm77, %v1301, 0
    %v1402 = vsel %vm77, %v1302, 0
    %v1405 = vsel %vm77, %v1303, 0
    %v1408 = vsel %vm77, %v1304, 0
    %v1411 = vsel %vm77, %v1305, 0
    %v1414 = vsel %vm77, %v1306, 0
    %1416 = vmatprep.subr.mxu0 0.0
    %1417 = vmatpush1.msra.mxu0 0.0
    %1418 = vmatprep.subr.mxu0 0.0
    %1419 = vmatpush1.msra.mxu0 0.0
    %1420 = vmatprep.subr.mxu0 0.0
    %1421 = vmatpush1.msra.mxu0 0.0
    %1422 = vmatprep.subr.mxu0 0.0
    %1423 = vmatpush1.msra.mxu0 0.0
    %1424 = vmatprep.subr.mxu0 0.0
    %1425 = vmatpush1.msra.mxu0 0.0
    %1426 = vmatprep.subr.mxu0 0.0
    %1427 = vmatpush1.msra.mxu0 0.0
    %1428 = vmatprep.subr.mxu0 0.0
    %1429 = vmatpush1.msra.mxu0 0.0
    %1430 = vmatprep.subr.mxu0 0.0
    %1431 = vmatpush1.msra.mxu0 0.0
    %1432 = vmatprep.subr.mxu0 0.0
    %1433 = vmatpush1.msra.mxu0 0.0
    %1434 = vmatprep.subr.mxu0 0.0
    %1435 = vmatpush1.msra.mxu0 0.0
    %1436 = vmatprep.subr.mxu0 0.0
    %1437 = vmatpush1.msra.mxu0 0.0
    %1438 = vmatprep.subr.mxu0 0.0
    %1439 = vmatpush1.msra.mxu0 0.0
    %1440 = vmatprep.subr.mxu0 0.0
    %1441 = vmatpush1.msra.mxu0 %v1391
    %1442 = vmatprep.subr.mxu0 0.0
    %1443 = vmatpush1.msra.mxu0 %v1390
    %1444 = vmatprep.subr.mxu0 0.0
    %1445 = vmatpush1.msra.mxu0 %v1389
    %1446 = vmatprep.subr.mxu0 0.0
    %1447 = vmatpush1.msra.mxu0 %v1388
    %1448 = vmatprep.subr.mxu0 0.0
    %1449 = vmatpush2.msra.mxu0 0.0
    %1450 = vmatprep.subr.mxu0 0.0
    %1451 = vmatpush2.msra.mxu0 0.0
    %1452 = vmatprep.subr.mxu0 0.0
    %1453 = vmatpush2.msra.mxu0 0.0
    %1454 = vmatprep.subr.mxu0 0.0
    %1455 = vmatpush2.msra.mxu0 0.0
    %1456 = vmatprep.subr.mxu0 0.0
    %1457 = vmatpush2.msra.mxu0 0.0
    %1458 = vmatprep.subr.mxu0 0.0
    %1459 = vmatpush2.msra.mxu0 0.0
    %1460 = vmatprep.subr.mxu0 0.0
    %1461 = vmatpush2.msra.mxu0 0.0
    %1462 = vmatprep.subr.mxu0 0.0
    %1463 = vmatpush2.msra.mxu0 0.0
    %1464 = vmatprep.subr.mxu0 0.0
    %1465 = vmatpush2.msra.mxu0 0.0
    %1466 = vmatprep.subr.mxu0 0.0
    %1467 = vmatpush2.msra.mxu0 0.0
    %1468 = vmatprep.subr.mxu0 0.0
    %1469 = vmatpush2.msra.mxu0 0.0
    %1470 = vmatprep.subr.mxu0 0.0
    %1471 = vmatpush2.msra.mxu0 0.0
    %1472 = vmatprep.subr.mxu0 0.0
    %1473 = vmatpush2.msra.mxu0 0.0
    %1474 = vmatprep.subr.mxu0 0.0
    %1475 = vmatpush2.msra.mxu0 0.0
    %1476 = vmatprep.subr.mxu0 0.0
    %1477 = vmatpush2.msra.mxu0 0.0
    %1478 = vmatprep.subr.mxu0 0.0
    %1479 = vmatpush2.msra.mxu0 0.0
    %1480 = vmatprep.mubr.f32.mxu0 0.0
    %1481 = vmatmul.mubr.f32.gmra.mxu0 %v1393
    %v1482 = vpop.f32.mrf.mxu0
    %v1483 = vadd.f32 0.0, %v1482
    %v1484 = vpop.f32.mrf.mxu0
    %1485 = vmatprep.mubr.f32.mxu0 0.0
    %1486 = vmatmul.mubr.f32.gmra.mxu0 %v1396
    %v1487 = vpop.f32.mrf.mxu0
    %v1488 = vadd.f32 0.0, %v1487
    %v1489 = vpop.f32.mrf.mxu0
    %1490 = vmatprep.mubr.f32.mxu0 0.0
    %1491 = vmatmul.mubr.f32.gmra.mxu0 %v1399
    %v1492 = vpop.f32.mrf.mxu0
    %v1493 = vadd.f32 0.0, %v1492
    %v1494 = vpop.f32.mrf.mxu0
    %1495 = vmatprep.mubr.f32.mxu0 0.0
    %1496 = vmatmul.mubr.f32.gmra.mxu0 %v1402
    %v1497 = vpop.f32.mrf.mxu0
    %v1498 = vadd.f32 0.0, %v1497
    %v1499 = vpop.f32.mrf.mxu0
    %1500 = vmatprep.mubr.f32.mxu0 0.0
    %1501 = vmatmul.mubr.f32.gmra.mxu0 %v1405
    %v1502 = vpop.f32.mrf.mxu0
    %v1503 = vadd.f32 0.0, %v1502
    %v1504 = vpop.f32.mrf.mxu0
    %1505 = vmatprep.mubr.f32.mxu0 0.0
    %1506 = vmatmul.mubr.f32.gmra.mxu0 %v1408
    %v1507 = vpop.f32.mrf.mxu0
    %v1508 = vadd.f32 0.0, %v1507
    %v1509 = vpop.f32.mrf.mxu0
    %1510 = vmatprep.mubr.f32.mxu0 0.0
    %1511 = vmatmul.mubr.f32.gmra.mxu0 %v1411
    %v1512 = vpop.f32.mrf.mxu0
    %v1513 = vadd.f32 0.0, %v1512
    %v1514 = vpop.f32.mrf.mxu0
    %1515 = vmatprep.mubr.f32.mxu0 0.0
    %1516 = vmatmul.mubr.f32.gmra.mxu0 %v1414
    %v1517 = vpop.f32.mrf.mxu0
    %v1518 = vadd.f32 0.0, %v1517
    %v1519 = vpop.f32.mrf.mxu0
    %1520 = vdwg.mxu0
    %v1521 = vadd.f32 %v1483, %v1385
    %v1522 = vadd.f32 %v1488, %v1385
    %v1523 = vadd.f32 %v1493, %v1385
    %v1524 = vadd.f32 %v1498, %v1385
    %v1525 = vadd.f32 %v1503, %v1385
    %v1526 = vadd.f32 %v1508, %v1385
    %v1527 = vadd.f32 %v1513, %v1385
    %v1528 = vadd.f32 %v1518, %v1385
    %v1529 = vtanh.pop %v1521
    %v1530 = vtanh.pop %v1522
    %v1531 = vtanh.pop %v1523
    %v1532 = vtanh.pop %v1524
    %v1533 = vtanh.pop %v1525
    %v1534 = vtanh.pop %v1526
    %v1535 = vtanh.pop %v1527
    %v1536 = vtanh.pop %v1528
    %v1537 = vld [vmem:[%s11] sm:$0x1]
    %v1539 = vlaneseq
    %v1540 = vshrl.u32 %v1539, 7
    %v1541 = vsub.s32 0, %v1540
    %v1542 = vrot.slane %v1537, %v1541
    %v1544 = vmul.f32 %v1529, %v1542
    %v1545 = vmul.f32 %v1530, %v1542
    %v1546 = vmul.f32 %v1531, %v1542
    %v1547 = vmul.f32 %v1532, %v1542
    %v1548 = vmul.f32 %v1533, %v1542
    %v1549 = vmul.f32 %v1534, %v1542
    %v1550 = vmul.f32 %v1535, %v1542
    %v1551 = vmul.f32 %v1536, %v1542
    %v1552 = vsel %vm77, %v1544, 0.0
    %1553 = vadd.xlane.f32.xlu0 %v1552
    %v1554 = vpop.xlane.xlu0 %1553
    %v1555 = vsel %vm77, %v1545, 0.0
    %1556 = vadd.xlane.f32.xlu0 %v1555
    %v1557 = vpop.xlane.xlu0 %1556
    %v1558 = vsel %vm77, %v1546, 0.0
    %1559 = vadd.xlane.f32.xlu0 %v1558
    %v1560 = vpop.xlane.xlu0 %1559
    %v1561 = vsel %vm77, %v1547, 0.0
    %1562 = vadd.xlane.f32.xlu0 %v1561
    %v1563 = vpop.xlane.xlu0 %1562
    %v1564 = vsel %vm77, %v1548, 0.0
    %1565 = vadd.xlane.f32.xlu0 %v1564
    %v1566 = vpop.xlane.xlu0 %1565
    %v1567 = vsel %vm77, %v1549, 0.0
    %1568 = vadd.xlane.f32.xlu0 %v1567
    %v1569 = vpop.xlane.xlu0 %1568
    %v1570 = vsel %vm77, %v1550, 0.0
    %1571 = vadd.xlane.f32.xlu0 %v1570
    %v1572 = vpop.xlane.xlu0 %1571
    %v1573 = vsel %vm77, %v1551, 0.0
    %1574 = vadd.xlane.f32.xlu0 %v1573
    %v1575 = vpop.xlane.xlu0 %1574
    %1584 = vrot.lane.b32.xlu0 %v1544, 96
    %v1585 = vpop.permute.xlu0 %1584
    %1586 = vrot.lane.b32.xlu0 %v1545, 96
    %v1587 = vpop.permute.xlu0 %1586
    %1588 = vrot.lane.b32.xlu0 %v1546, 96
    %v1589 = vpop.permute.xlu0 %1588
    %1590 = vrot.lane.b32.xlu0 %v1547, 96
    %v1591 = vpop.permute.xlu0 %1590
    %1592 = vrot.lane.b32.xlu0 %v1548, 96
    %v1593 = vpop.permute.xlu0 %1592
    %1594 = vrot.lane.b32.xlu0 %v1549, 96
    %v1595 = vpop.permute.xlu0 %1594
    %1596 = vrot.lane.b32.xlu0 %v1550, 96
    %v1597 = vpop.permute.xlu0 %1596
    %1598 = vrot.lane.b32.xlu0 %v1551, 96
    %v1599 = vpop.permute.xlu0 %1598
    %v1608 = vsel %vm77, %v1585, 0.0
    %1609 = vadd.xlane.f32.xlu0 %v1608
    %v1610 = vpop.xlane.xlu0 %1609
    %v1611 = vsel %vm77, %v1587, 0.0
    %1612 = vadd.xlane.f32.xlu0 %v1611
    %v1613 = vpop.xlane.xlu0 %1612
    %v1614 = vsel %vm77, %v1589, 0.0
    %1615 = vadd.xlane.f32.xlu0 %v1614
    %v1616 = vpop.xlane.xlu0 %1615
    %v1617 = vsel %vm77, %v1591, 0.0
    %1618 = vadd.xlane.f32.xlu0 %v1617
    %v1619 = vpop.xlane.xlu0 %1618
    %v1620 = vsel %vm77, %v1593, 0.0
    %1621 = vadd.xlane.f32.xlu0 %v1620
    %v1622 = vpop.xlane.xlu0 %1621
    %v1623 = vsel %vm77, %v1595, 0.0
    %1624 = vadd.xlane.f32.xlu0 %v1623
    %v1625 = vpop.xlane.xlu0 %1624
    %v1626 = vsel %vm77, %v1597, 0.0
    %1627 = vadd.xlane.f32.xlu0 %v1626
    %v1628 = vpop.xlane.xlu0 %1627
    %v1629 = vsel %vm77, %v1599, 0.0
    %1630 = vadd.xlane.f32.xlu0 %v1629
    %v1631 = vpop.xlane.xlu0 %1630
    %v1632 = vld [vmem:[%s2] sm:$0xff]
    %v1633 = vld [vmem:[%s2 + $0x8] sm:$0xff]
    %v1634 = vld [vmem:[%s2 + $0x10] sm:$0xff]
    %v1635 = vld [vmem:[%s2 + $0x18] sm:$0xff]
    %v1636 = vld [vmem:[%s2 + $0x20] sm:$0xff]
    %v1637 = vld [vmem:[%s2 + $0x28] sm:$0xff]
    %v1638 = vld [vmem:[%s2 + $0x30] sm:$0xff]
    %v1639 = vld [vmem:[%s2 + $0x38] sm:$0xff]
    %v1640 = vadd.f32 %v1554, %v1632
    %v1641 = vadd.f32 %v1557, %v1633
    %v1642 = vadd.f32 %v1560, %v1634
    %v1643 = vadd.f32 %v1563, %v1635
    %v1644 = vadd.f32 %v1566, %v1636
    %v1645 = vadd.f32 %v1569, %v1637
    %v1646 = vadd.f32 %v1572, %v1638
    %v1647 = vadd.f32 %v1575, %v1639
    %vm1648 = vcmask 7168
    %v1649 = vsel %vm1648, %v1640, -inf
    %v1650 = vsel %vm1648, %v1641, -inf
    %v1651 = vsel %vm1648, %v1642, -inf
    %v1652 = vsel %vm1648, %v1643, -inf
    %v1653 = vsel %vm1648, %v1644, -inf
    %v1654 = vmax.f32 %v1649, %v1653
    %v1655 = vsel %vm1648, %v1645, -inf
    %v1656 = vmax.f32 %v1650, %v1655
    %v1657 = vsel %vm1648, %v1646, -inf
    %v1658 = vmax.f32 %v1651, %v1657
    %v1659 = vsel %vm1648, %v1647, -inf
    %v1660 = vmax.f32 %v1652, %v1659
    %v1661 = vmax.f32 %v1654, %v1656
    %v1662 = vmax.f32 %v1658, %v1660
    %v1663 = vmax.f32 %v1661, %v1662
    %v1664 = vsub.f32 %v1640, %v1663
    %v1665 = vsub.f32 %v1641, %v1663
    %v1666 = vsub.f32 %v1642, %v1663
    %v1667 = vsub.f32 %v1643, %v1663
    %v1668 = vsub.f32 %v1644, %v1663
    %v1669 = vsub.f32 %v1645, %v1663
    %v1670 = vsub.f32 %v1646, %v1663
    %v1671 = vsub.f32 %v1647, %v1663
    %v1672 = vmul.f32 %v1664, 1.442695
    %v1673 = vpow.pop %v1672
    %v1674 = vmul.f32 %v1665, 1.442695
    %v1675 = vpow.pop %v1674
    %v1676 = vmul.f32 %v1666, 1.442695
    %v1677 = vpow.pop %v1676
    %v1678 = vmul.f32 %v1667, 1.442695
    %v1679 = vpow.pop %v1678
    %v1680 = vmul.f32 %v1668, 1.442695
    %v1681 = vpow.pop %v1680
    %v1682 = vmul.f32 %v1669, 1.442695
    %v1683 = vpow.pop %v1682
    %v1684 = vmul.f32 %v1670, 1.442695
    %v1685 = vpow.pop %v1684
    %v1686 = vmul.f32 %v1671, 1.442695
    %v1687 = vpow.pop %v1686
    %v1688 = vsel %vm1648, %v1673, 0.0
    %v1689 = vsel %vm1648, %v1675, 0.0
    %v1690 = vadd.f32 %v1688, %v1689
    %v1691 = vsel %vm1648, %v1677, 0.0
    %v1692 = vadd.f32 %v1690, %v1691
    %v1693 = vsel %vm1648, %v1679, 0.0
    %v1694 = vadd.f32 %v1692, %v1693
    %v1695 = vsel %vm1648, %v1681, 0.0
    %v1696 = vadd.f32 %v1694, %v1695
    %v1697 = vsel %vm1648, %v1683, 0.0
    %v1698 = vadd.f32 %v1696, %v1697
    %v1699 = vsel %vm1648, %v1685, 0.0
    %v1700 = vadd.f32 %v1698, %v1699
    %v1701 = vsel %vm1648, %v1687, 0.0
    %v1702 = vadd.f32 %v1700, %v1701
    %v1703 = vrcp.pop %v1702
    %v1704 = vmul.f32 %v1673, %v1703
    %v1705 = vmul.f32 %v1675, %v1703
    %v1706 = vmul.f32 %v1677, %v1703
    %v1707 = vmul.f32 %v1679, %v1703
    %v1708 = vmul.f32 %v1681, %v1703
    %v1709 = vmul.f32 %v1683, %v1703
    %v1710 = vmul.f32 %v1685, %v1703
    %v1711 = vmul.f32 %v1687, %v1703
    %v1712 = vadd.f32 %v1610, %v1632
    %v1713 = vadd.f32 %v1613, %v1633
    %v1714 = vadd.f32 %v1616, %v1634
    %v1715 = vadd.f32 %v1619, %v1635
    %v1716 = vadd.f32 %v1622, %v1636
    %v1717 = vadd.f32 %v1625, %v1637
    %v1718 = vadd.f32 %v1628, %v1638
    %v1719 = vadd.f32 %v1631, %v1639
    %v1720 = vsel %vm1648, %v1712, -inf
    %v1721 = vsel %vm1648, %v1713, -inf
    %v1722 = vsel %vm1648, %v1714, -inf
    %v1723 = vsel %vm1648, %v1715, -inf
    %v1724 = vsel %vm1648, %v1716, -inf
    %v1725 = vmax.f32 %v1720, %v1724
    %v1726 = vsel %vm1648, %v1717, -inf
    %v1727 = vmax.f32 %v1721, %v1726
    %v1728 = vsel %vm1648, %v1718, -inf
    %v1729 = vmax.f32 %v1722, %v1728
    %v1730 = vsel %vm1648, %v1719, -inf
    %v1731 = vmax.f32 %v1723, %v1730
    %v1732 = vmax.f32 %v1725, %v1727
    %v1733 = vmax.f32 %v1729, %v1731
    %v1734 = vmax.f32 %v1732, %v1733
    %v1735 = vsub.f32 %v1712, %v1734
    %v1736 = vsub.f32 %v1713, %v1734
    %v1737 = vsub.f32 %v1714, %v1734
    %v1738 = vsub.f32 %v1715, %v1734
    %v1739 = vsub.f32 %v1716, %v1734
    %v1740 = vsub.f32 %v1717, %v1734
    %v1741 = vsub.f32 %v1718, %v1734
    %v1742 = vsub.f32 %v1719, %v1734
    %v1743 = vmul.f32 %v1735, 1.442695
    %v1744 = vpow.pop %v1743
    %v1745 = vmul.f32 %v1736, 1.442695
    %v1746 = vpow.pop %v1745
    %v1747 = vmul.f32 %v1737, 1.442695
    %v1748 = vpow.pop %v1747
    %v1749 = vmul.f32 %v1738, 1.442695
    %v1750 = vpow.pop %v1749
    %v1751 = vmul.f32 %v1739, 1.442695
    %v1752 = vpow.pop %v1751
    %v1753 = vmul.f32 %v1740, 1.442695
    %v1754 = vpow.pop %v1753
    %v1755 = vmul.f32 %v1741, 1.442695
    %v1756 = vpow.pop %v1755
    %v1757 = vmul.f32 %v1742, 1.442695
    %v1758 = vpow.pop %v1757
    %v1759 = vsel %vm1648, %v1744, 0.0
    %v1760 = vsel %vm1648, %v1746, 0.0
    %v1761 = vadd.f32 %v1759, %v1760
    %v1762 = vsel %vm1648, %v1748, 0.0
    %v1763 = vadd.f32 %v1761, %v1762
    %v1764 = vsel %vm1648, %v1750, 0.0
    %v1765 = vadd.f32 %v1763, %v1764
    %v1766 = vsel %vm1648, %v1752, 0.0
    %v1767 = vadd.f32 %v1765, %v1766
    %v1768 = vsel %vm1648, %v1754, 0.0
    %v1769 = vadd.f32 %v1767, %v1768
    %v1770 = vsel %vm1648, %v1756, 0.0
    %v1771 = vadd.f32 %v1769, %v1770
    %v1772 = vsel %vm1648, %v1758, 0.0
    %v1773 = vadd.f32 %v1771, %v1772
    %v1774 = vrcp.pop %v1773
    %v1775 = vmul.f32 %v1744, %v1774
    %v1776 = vmul.f32 %v1746, %v1774
    %v1777 = vmul.f32 %v1748, %v1774
    %v1778 = vmul.f32 %v1750, %v1774
    %v1779 = vmul.f32 %v1752, %v1774
    %v1780 = vmul.f32 %v1754, %v1774
    %v1781 = vmul.f32 %v1756, %v1774
    %v1782 = vmul.f32 %v1758, %v1774
    %1784 = vset.pattern.permute.xlu0 0
    %1785 = vperm.xlu0 %1784, %v1704
    %v1786 = vpop.permute.xlu0 %1785
    %1789 = vset.pattern.permute.xlu0 0
    %1790 = vperm.xlu0 %1789, %v1705
    %v1791 = vpop.permute.xlu0 %1790
    %1794 = vset.pattern.permute.xlu0 0
    %1795 = vperm.xlu0 %1794, %v1706
    %v1796 = vpop.permute.xlu0 %1795
    %1799 = vset.pattern.permute.xlu0 0
    %1800 = vperm.xlu0 %1799, %v1707
    %v1801 = vpop.permute.xlu0 %1800
    %1804 = vset.pattern.permute.xlu0 0
    %1805 = vperm.xlu0 %1804, %v1708
    %v1806 = vpop.permute.xlu0 %1805
    %1809 = vset.pattern.permute.xlu0 0
    %1810 = vperm.xlu0 %1809, %v1709
    %v1811 = vpop.permute.xlu0 %1810
    %1814 = vset.pattern.permute.xlu0 0
    %1815 = vperm.xlu0 %1814, %v1710
    %v1816 = vpop.permute.xlu0 %1815
    %1819 = vset.pattern.permute.xlu0 0
    %1820 = vperm.xlu0 %1819, %v1711
    %v1821 = vpop.permute.xlu0 %1820
    %v1823 = vmul.f32 %v1786, %v1299
    %v1824 = vmul.f32 %v1791, %v1300
    %v1825 = vmul.f32 %v1796, %v1301
    %v1826 = vmul.f32 %v1801, %v1302
    %v1827 = vmul.f32 %v1806, %v1303
    %v1828 = vmul.f32 %v1811, %v1304
    %v1829 = vmul.f32 %v1816, %v1305
    %v1830 = vmul.f32 %v1821, %v1306
    %v1831 = vsel %vm77, %v1823, 0.0
    %v1832 = vsel %vm77, %v1824, 0.0
    %v1833 = vadd.f32 %v1831, %v1832
    %v1834 = vsel %vm77, %v1825, 0.0
    %v1835 = vadd.f32 %v1833, %v1834
    %v1836 = vsel %vm77, %v1826, 0.0
    %v1837 = vadd.f32 %v1835, %v1836
    %v1838 = vsel %vm77, %v1827, 0.0
    %v1839 = vadd.f32 %v1837, %v1838
    %v1840 = vsel %vm77, %v1828, 0.0
    %v1841 = vadd.f32 %v1839, %v1840
    %v1842 = vsel %vm77, %v1829, 0.0
    %v1843 = vadd.f32 %v1841, %v1842
    %v1844 = vsel %vm77, %v1830, 0.0
    %v1845 = vadd.f32 %v1843, %v1844
    %1847 = vset.pattern.permute.xlu0 0
    %1848 = vperm.xlu0 %1847, %v1775
    %v1849 = vpop.permute.xlu0 %1848
    %1852 = vset.pattern.permute.xlu0 0
    %1853 = vperm.xlu0 %1852, %v1776
    %v1854 = vpop.permute.xlu0 %1853
    %1857 = vset.pattern.permute.xlu0 0
    %1858 = vperm.xlu0 %1857, %v1777
    %v1859 = vpop.permute.xlu0 %1858
    %1862 = vset.pattern.permute.xlu0 0
    %1863 = vperm.xlu0 %1862, %v1778
    %v1864 = vpop.permute.xlu0 %1863
    %1867 = vset.pattern.permute.xlu0 0
    %1868 = vperm.xlu0 %1867, %v1779
    %v1869 = vpop.permute.xlu0 %1868
    %1872 = vset.pattern.permute.xlu0 0
    %1873 = vperm.xlu0 %1872, %v1780
    %v1874 = vpop.permute.xlu0 %1873
    %1877 = vset.pattern.permute.xlu0 0
    %1878 = vperm.xlu0 %1877, %v1781
    %v1879 = vpop.permute.xlu0 %1878
    %1882 = vset.pattern.permute.xlu0 0
    %1883 = vperm.xlu0 %1882, %v1782
    %v1884 = vpop.permute.xlu0 %1883
    %v1886 = vmul.f32 %v1849, %v1299
    %v1887 = vmul.f32 %v1854, %v1300
    %v1888 = vmul.f32 %v1859, %v1301
    %v1889 = vmul.f32 %v1864, %v1302
    %v1890 = vmul.f32 %v1869, %v1303
    %v1891 = vmul.f32 %v1874, %v1304
    %v1892 = vmul.f32 %v1879, %v1305
    %v1893 = vmul.f32 %v1884, %v1306
    %v1894 = vsel %vm77, %v1886, 0.0
    %v1895 = vsel %vm77, %v1887, 0.0
    %v1896 = vadd.f32 %v1894, %v1895
    %v1897 = vsel %vm77, %v1888, 0.0
    %v1898 = vadd.f32 %v1896, %v1897
    %v1899 = vsel %vm77, %v1889, 0.0
    %v1900 = vadd.f32 %v1898, %v1899
    %v1901 = vsel %vm77, %v1890, 0.0
    %v1902 = vadd.f32 %v1900, %v1901
    %v1903 = vsel %vm77, %v1891, 0.0
    %v1904 = vadd.f32 %v1902, %v1903
    %v1905 = vsel %vm77, %v1892, 0.0
    %v1906 = vadd.f32 %v1904, %v1905
    %v1907 = vsel %vm77, %v1893, 0.0
    %v1908 = vadd.f32 %v1906, %v1907
    %v1909 = vmul.f32 %v1704, %v1704
    %v1910 = vmul.f32 %v1705, %v1705
    %v1911 = vmul.f32 %v1706, %v1706
    %v1912 = vmul.f32 %v1707, %v1707
    %v1913 = vmul.f32 %v1708, %v1708
    %v1914 = vmul.f32 %v1709, %v1709
    %v1915 = vmul.f32 %v1710, %v1710
    %v1916 = vmul.f32 %v1711, %v1711
    %v1917 = vsel %vm1648, %v1909, 0.0
    %v1918 = vsel %vm1648, %v1910, 0.0
    %v1919 = vadd.f32 %v1917, %v1918
    %v1920 = vsel %vm1648, %v1911, 0.0
    %v1921 = vadd.f32 %v1919, %v1920
    %v1922 = vsel %vm1648, %v1912, 0.0
    %v1923 = vadd.f32 %v1921, %v1922
    %v1924 = vsel %vm1648, %v1913, 0.0
    %v1925 = vadd.f32 %v1923, %v1924
    %v1926 = vsel %vm1648, %v1914, 0.0
    %v1927 = vadd.f32 %v1925, %v1926
    %v1928 = vsel %vm1648, %v1915, 0.0
    %v1929 = vadd.f32 %v1927, %v1928
    %v1930 = vsel %vm1648, %v1916, 0.0
    %v1931 = vadd.f32 %v1929, %v1930
    %v1932 = vmul.f32 %v1775, %v1775
    %v1933 = vmul.f32 %v1776, %v1776
    %v1934 = vmul.f32 %v1777, %v1777
    %v1935 = vmul.f32 %v1778, %v1778
    %v1936 = vmul.f32 %v1779, %v1779
    %v1937 = vmul.f32 %v1780, %v1780
    %v1938 = vmul.f32 %v1781, %v1781
    %v1939 = vmul.f32 %v1782, %v1782
    %v1940 = vsel %vm1648, %v1932, 0.0
    %v1941 = vsel %vm1648, %v1933, 0.0
    %v1942 = vadd.f32 %v1940, %v1941
    %v1943 = vsel %vm1648, %v1934, 0.0
    %v1944 = vadd.f32 %v1942, %v1943
    %v1945 = vsel %vm1648, %v1935, 0.0
    %v1946 = vadd.f32 %v1944, %v1945
    %v1947 = vsel %vm1648, %v1936, 0.0
    %v1948 = vadd.f32 %v1946, %v1947
    %v1949 = vsel %vm1648, %v1937, 0.0
    %v1950 = vadd.f32 %v1948, %v1949
    %v1951 = vsel %vm1648, %v1938, 0.0
    %v1952 = vadd.f32 %v1950, %v1951
    %v1953 = vsel %vm1648, %v1939, 0.0
    %v1954 = vadd.f32 %v1952, %v1953
    %v1955 = vmul.f32 %v1704, %v1775
    %v1956 = vmul.f32 %v1705, %v1776
    %v1957 = vmul.f32 %v1706, %v1777
    %v1958 = vmul.f32 %v1707, %v1778
    %v1959 = vmul.f32 %v1708, %v1779
    %v1960 = vmul.f32 %v1709, %v1780
    %v1961 = vmul.f32 %v1710, %v1781
    %v1962 = vmul.f32 %v1711, %v1782
    %v1963 = vsel %vm1648, %v1955, 0.0
    %v1964 = vsel %vm1648, %v1956, 0.0
    %v1965 = vadd.f32 %v1963, %v1964
    %v1966 = vsel %vm1648, %v1957, 0.0
    %v1967 = vadd.f32 %v1965, %v1966
    %v1968 = vsel %vm1648, %v1958, 0.0
    %v1969 = vadd.f32 %v1967, %v1968
    %v1970 = vsel %vm1648, %v1959, 0.0
    %v1971 = vadd.f32 %v1969, %v1970
    %v1972 = vsel %vm1648, %v1960, 0.0
    %v1973 = vadd.f32 %v1971, %v1972
    %v1974 = vsel %vm1648, %v1961, 0.0
    %v1975 = vadd.f32 %v1973, %v1974
    %v1976 = vsel %vm1648, %v1962, 0.0
    %v1977 = vadd.f32 %v1975, %v1976
    %v1978 = vmul.f32 %v1931, %v1931
    %v1979 = vmul.f32 %v1977, 2.0
    %v1980 = vmul.f32 %v1979, %v1977
    %v1981 = vadd.f32 %v1978, %v1980
    %v1982 = vmul.f32 %v1954, %v1954
    %v1983 = vadd.f32 %v1981, %v1982
    %v1984 = vadd.f32 %v1931, %v1954
    %v1985 = vmul.f32 %v1984, 2.0
    %v1986 = vsub.f32 %v1983, %v1985
    %v1987 = vadd.f32 %v1986, 8.0
    %1988 = vst.msk [vmem:[%s16] sm:$0xff] %vm1648, %v1987
    %v1989 = vld [vmem:[%s12] sm:$0x1]
    %v1991 = vlaneseq
    %v1992 = vshrl.u32 %v1991, 7
    %v1993 = vsub.s32 0, %v1992
    %v1994 = vrot.slane %v1989, %v1993
    %v1996 = vmul.f32 %v1845, %v1994
    %v1997 = vsel %vm77, %v1996, 0.0
    %1998 = vadd.xlane.f32.xlu0 %v1997
    %v1999 = vpop.xlane.xlu0 %1998
    %v2000 = vld [vmem:[%s13] sm:$0x1]
    %v2002 = vlaneseq
    %v2003 = vshrl.u32 %v2002, 7
    %v2004 = vsub.s32 0, %v2003
    %v2005 = vrot.slane %v2000, %v2004
    %v2007 = vmul.f32 %v1908, %v2005
    %v2008 = vsel %vm77, %v2007, 0.0
    %2009 = vadd.xlane.f32.xlu0 %v2008
    %v2010 = vpop.xlane.xlu0 %2009
    %v2011 = vsel %vm1648, %v1999, %v2010
    %v2012 = vld [vmem:[%s14] sm:$0x1]
    %v2014 = vlaneseq
    %v2015 = vshrl.u32 %v2014, 7
    %v2016 = vsub.s32 0, %v2015
    %v2017 = vrot.slane %v2012, %v2016
    %v2019 = vadd.f32 %v2011, %v2017
    %vm2020 = vcmask 15360
    %2021 = vst.msk [vmem:[%s15] sm:$0xff] %vm2020, %v2019
    // Predicated region
    $region66: #{tpu_custom_call.1} parent=1 // pred_check
      _
    $region67: #{tpu_custom_call.1} parent=1 // pred_check_branch
      %2023 = sbr.rel (0) target = $region69
    $region68: #{tpu_custom_call.1} parent=1 // pred_region
      _
    $region69: #{tpu_custom_call.1} parent=1 // pred_fallthru
      _
    // Predicated region
    $region70: #{tpu_custom_call.1} parent=1 // pred_check
      _
    $region71: #{tpu_custom_call.1} parent=1 // pred_check_branch
      %2025 = sbr.rel (0) target = $region73
    $region72: #{tpu_custom_call.1} parent=1 // pred_region
      _
    $region73: #{tpu_custom_call.1} parent=1 // pred_fallthru
      _
    // Predicated region
    $region74: #{tpu_custom_call.1} parent=1 // pred_check
      _
    $region75: #{tpu_custom_call.1} parent=1 // pred_check_branch
      %2027 = sbr.rel (0) target = $region77
    $region76: #{tpu_custom_call.1} parent=1 // pred_region
      _
    $region77: #{tpu_custom_call.1} parent=1 // pred_fallthru
      _
    // Predicated region
    $region78: #{tpu_custom_call.1} parent=1 // pred_check
      _
    $region79: #{tpu_custom_call.1} parent=1 // pred_check_branch
      %2029 = sbr.rel (0) target = $region81
    $region80: #{tpu_custom_call.1} parent=1 // pred_region
      _
    $region81: #{tpu_custom_call.1} parent=1 // pred_fallthru
      _
    %2030 = vsyncpa [#allocation7], 1

</llo_original>
